<compile_context>
chip_gen: v7x
topology: tpu7x:2x2x1
jax: 0.10.0
libtpu: 0.0.40
codegen_flags: <defaults>
</compile_context>

<pallas_src>
import functools

import jax
import jax.numpy as jnp
from jax import lax
from jax.experimental import pallas as pl
from jax.experimental.pallas import tpu as pltpu


def _round_up(n, m):
    return ((n + m - 1) // m) * m


def _pc_rnn_kernel(x_ref, h_init_ref, w_rT_ref, b_r_ref, w_oT_ref, w_o_ref,
                   b_o_ref, err_ref, h_ref, *, tau_h, alpha_x, time_chunk):
    """One grid step = one (batch_tile, time_chunk) block of the recurrence."""
    c = pl.program_id(1)  # time-chunk index (sequential, "arbitrary")

    @pl.when(c == 0)
    def _():
        # Start of this batch tile's time sweep: (re)load the initial state.
        h_ref[...] = h_init_ref[...]

    # Hoist loop-invariant loads / scalars out of the time loop (once per chunk).
    w_rT = w_rT_ref[...]                  # (S, S)  pre-transposed in the wrapper
    w_oT = w_oT_ref[...]                  # (S, O)  pre-transposed in the wrapper
    b_r = b_r_ref[...]                    # (1, S)
    b_o = b_o_ref[...]                    # (1, O)
    inv_tau = 1.0 / tau_h
    keep = 1.0 - inv_tau
    w_o = w_o_ref[...] if alpha_x > 0 else None   # (O, S) for the PC correction

    def step(t, h):
        # h_prior = (1 - 1/tau) * h + (1/tau) * (tanh(h) @ w_r.T + b_r)
        rec = jnp.dot(jnp.tanh(h), w_rT, preferred_element_type=jnp.float32) + b_r
        h_prior = keep * h + inv_tau * rec
        th = jnp.tanh(h_prior)            # computed once, reused twice below
        # x_pred = tanh(h_prior) @ w_o.T + b_o
        x_pred = jnp.dot(th, w_oT, preferred_element_type=jnp.float32) + b_o
        error = x_pred - x_ref[t]         # (B, O)
        err_ref[t] = error                # VMEM store; HBM writeback once/chunk
        if alpha_x > 0:
            # h_post = h_prior - alpha_x * (1 - tanh(h_prior)^2) * (error @ w_o)
            back = jnp.dot(error, w_o, preferred_element_type=jnp.float32)
            return h_prior - alpha_x * (1.0 - th * th) * back
        return h_prior

    # Hidden state carried in registers across the chunk; spilled once at the end.
    h_final = lax.fori_loop(0, time_chunk, step, h_ref[...],
                            unroll=bool(time_chunk <= 32))
    h_ref[...] = h_final


def pc_rnn_v_forward(x, h_init, w_r, b_r, w_o, b_o, *, tau_h, alpha_x,
                     time_chunk=None, batch_tile=None):
    """Pallas forward pass of PC_RNN_V. Returns errors of shape (T, B, O)."""
    seq_len, batch, output_dim = x.shape
    states_dim = w_r.shape[0]

    # ---- layout prep (one-time XLA work, outside the hot loop) -------------
    w_rT = jnp.asarray(w_r, jnp.float32).T              # (S, S) matmul-ready
    w_oT = jnp.asarray(w_o, jnp.float32).T              # (S, O) matmul-ready
    w_o_f = jnp.asarray(w_o, jnp.float32)               # (O, S) backward term
    b_r2 = jnp.asarray(b_r, jnp.float32).reshape(1, states_dim)
    b_o2 = jnp.asarray(b_o, jnp.float32).reshape(1, output_dim)

    # Batch padded to the f32 sublane (8); batch tiles feed a "parallel" grid
    # axis so v7x's two TensorCores can each take independent batch slices.
    if batch_tile is None:
        batch_tile = _round_up(batch, 8)
    batch_tile = _round_up(batch_tile, 8)
    b_pad = _round_up(batch, batch_tile)

    # Chunk the time axis so the per-grid-step overhead is amortised and x /
    # errors move as a few large DMAs.
    if time_chunk is None:
        time_chunk = min(seq_len, 128)
    t_pad = _round_up(seq_len, time_chunk)

    x_p = jnp.zeros((t_pad, b_pad, output_dim), jnp.float32)
    x_p = x_p.at[:seq_len, :batch].set(x.astype(jnp.float32))
    h0_p = jnp.zeros((b_pad, states_dim), jnp.float32)
    h0_p = h0_p.at[:batch].set(jnp.asarray(h_init, jnp.float32))

    n_b = b_pad // batch_tile
    n_c = t_pad // time_chunk

    kernel = functools.partial(_pc_rnn_kernel, tau_h=float(tau_h),
                               alpha_x=float(alpha_x),
                               time_chunk=int(time_chunk))

    grid_spec = pltpu.PrefetchScalarGridSpec(
        num_scalar_prefetch=0,
        grid=(n_b, n_c),
        in_specs=[
            pl.BlockSpec((time_chunk, batch_tile, output_dim),
                         lambda b, c: (c, b, 0)),                        # x chunk
            pl.BlockSpec((batch_tile, states_dim), lambda b, c: (b, 0)),  # h_init
            pl.BlockSpec((states_dim, states_dim), lambda b, c: (0, 0)),  # w_r.T
            pl.BlockSpec((1, states_dim), lambda b, c: (0, 0)),           # b_r
            pl.BlockSpec((states_dim, output_dim), lambda b, c: (0, 0)),  # w_o.T
            pl.BlockSpec((output_dim, states_dim), lambda b, c: (0, 0)),  # w_o
            pl.BlockSpec((1, output_dim), lambda b, c: (0, 0)),           # b_o
        ],
        out_specs=pl.BlockSpec((time_chunk, batch_tile, output_dim),
                               lambda b, c: (c, b, 0)),
        scratch_shapes=[pltpu.VMEM((batch_tile, states_dim), jnp.float32)],
    )

    errs = pl.pallas_call(
        kernel,
        out_shape=jax.ShapeDtypeStruct((t_pad, b_pad, output_dim), jnp.float32),
        grid_spec=grid_spec,
        compiler_params=pltpu.CompilerParams(
            # batch tiles are independent; time chunks carry the recurrence.
            dimension_semantics=("parallel", "arbitrary")),
    )(x_p, h0_p, w_rT, b_r2, w_oT, w_o_f, b_o2)

    return errs[:seq_len, :batch]


def pc_rnn_v_reference(x, h_init, w_r, b_r, w_o, b_o, *, tau_h, alpha_x):
    """Pure-JAX reference matching the PyTorch forward()."""
    seq_len = x.shape[0]
    errs = []
    old_h = h_init
    inv_tau = 1.0 / tau_h
    for t in range(seq_len):
        h_prior = (1.0 - inv_tau) * old_h + inv_tau * (
            jnp.tanh(old_h) @ w_r.T + b_r[None, :])
        x_pred = jnp.tanh(h_prior) @ w_o.T + b_o[None, :]
        error = x_pred - x[t]
        errs.append(error)
        if alpha_x > 0:
            h_post = h_prior - alpha_x * (1.0 - jnp.tanh(h_prior) ** 2) * (error @ w_o)
            old_h = h_post
        else:
            old_h = h_prior
    return jnp.stack(errs, axis=0)


if __name__ == "__main__":
    # Shapes implied by the module: x is (seq_len, batch, output_dim).
    seq_len, batch = 8, 2
    states_dim, output_dim = 32, 4
    tau_h, alpha_x = 2.0, 0.1

    key = jax.random.PRNGKey(0)
    kx, kwo, kbo, kwr, kbr = jax.random.split(key, 5)

    # Deterministic "randn"-style parameter init matching __init__ scaling.
    w_o = jax.random.normal(kwo, (output_dim, states_dim), jnp.float32) / states_dim
    b_o = jax.random.normal(kbo, (output_dim,), jnp.float32) / 10.0
    w_r = jax.random.normal(kwr, (states_dim, states_dim), jnp.float32) / states_dim
    b_r = jax.random.normal(kbr, (states_dim,), jnp.float32) / 10.0

    x = jax.random.normal(kx, (seq_len, batch, output_dim), jnp.float32)
    h_init = jnp.zeros((batch, states_dim), jnp.float32)   # h_init=0 default

    errors = pc_rnn_v_forward(x, h_init, w_r, b_r, w_o, b_o,
                              tau_h=tau_h, alpha_x=alpha_x)
    errors = jax.block_until_ready(errors)

    ref = pc_rnn_v_reference(x, h_init, w_r, b_r, w_o, b_o,
                             tau_h=tau_h, alpha_x=alpha_x)
    assert errors.shape == (seq_len, batch, output_dim)
    assert jnp.allclose(errors, ref, atol=1e-5, rtol=1e-4)

    # TODO(synk): the store=True activation stash (x_preds/h_priors/h_posts/
    # error_hs) and learn() are not emitted; only the returned errors are.
    print("KERNEL_OK")
</pallas_src>

<mosaic_0001>
module attributes {stable_mosaic.version = 11 : i64} {
  func.func @_pc_rnn_kernel(%arg0: i32, %arg1: i32, %arg2: memref<8x8x4xf32, #tpu.memory_space<vmem>>, %arg3: memref<8x32xf32, #tpu.memory_space<vmem>>, %arg4: memref<32x32xf32, #tpu.memory_space<vmem>>, %arg5: memref<1x32xf32, #tpu.memory_space<vmem>>, %arg6: memref<32x4xf32, #tpu.memory_space<vmem>>, %arg7: memref<4x32xf32, #tpu.memory_space<vmem>>, %arg8: memref<1x4xf32, #tpu.memory_space<vmem>>, %arg9: memref<8x8x4xf32, #tpu.memory_space<vmem>>, %arg10: memref<8x32xf32, #tpu.memory_space<vmem>>) attributes {dimension_semantics = [#tpu.dimension_semantics<parallel>, #tpu.dimension_semantics<arbitrary>], iteration_bounds = array<i64: 1, 1>, scalar_prefetch = 0 : i64, scratch_operands = 1 : i64, tpu.core_type = #tpu.core_type<tc>, window_params = [{transform_indices = @transform_0, window_bounds = array<i64: 8, 8, 4>}, {transform_indices = @transform_1, window_bounds = array<i64: 8, 32>}, {pipeline_mode = #tpu.pipeline_mode<synchronous>, transform_indices = @transform_2, window_bounds = array<i64: 32, 32>}, {pipeline_mode = #tpu.pipeline_mode<synchronous>, transform_indices = @transform_3, window_bounds = array<i64: 1, 32>}, {pipeline_mode = #tpu.pipeline_mode<synchronous>, transform_indices = @transform_4, window_bounds = array<i64: 32, 4>}, {pipeline_mode = #tpu.pipeline_mode<synchronous>, transform_indices = @transform_5, window_bounds = array<i64: 4, 32>}, {pipeline_mode = #tpu.pipeline_mode<synchronous>, transform_indices = @transform_6, window_bounds = array<i64: 1, 4>}, {transform_indices = @transform_7, window_bounds = array<i64: 8, 8, 4>}]} {
    %c0_i32 = arith.constant 0 : i32
    %0 = arith.cmpi eq, %arg1, %c0_i32 : i32
    %1 = arith.extui %0 : i1 to i32
    %c0_i32_0 = arith.constant 0 : i32
    %2 = arith.cmpi ne, %1, %c0_i32_0 : i32
    scf.if %2 {
      %c0_102 = arith.constant 0 : index
      %c0_103 = arith.constant 0 : index
      %242 = vector.load %arg3[%c0_102, %c0_103] : memref<8x32xf32, #tpu.memory_space<vmem>>, vector<8x32xf32>
      %c0_104 = arith.constant 0 : index
      %c0_105 = arith.constant 0 : index
      %243 = vector.load %arg10[%c0_104, %c0_105] : memref<8x32xf32, #tpu.memory_space<vmem>>, vector<8x32xf32>
      tpu.vector_store %arg10[%c0_104, %c0_105], %242 {strides = array<i32>} : memref<8x32xf32, #tpu.memory_space<vmem>>, vector<8x32xf32>,
    } else {
    }
    %c0 = arith.constant 0 : index
    %c0_1 = arith.constant 0 : index
    %3 = vector.load %arg4[%c0, %c0_1] : memref<32x32xf32, #tpu.memory_space<vmem>>, vector<32x32xf32>
    %c0_2 = arith.constant 0 : index
    %c0_3 = arith.constant 0 : index
    %4 = vector.load %arg6[%c0_2, %c0_3] : memref<32x4xf32, #tpu.memory_space<vmem>>, vector<32x4xf32>
    %c0_4 = arith.constant 0 : index
    %c0_5 = arith.constant 0 : index
    %5 = vector.load %arg5[%c0_4, %c0_5] : memref<1x32xf32, #tpu.memory_space<vmem>>, vector<1x32xf32>
    %c0_6 = arith.constant 0 : index
    %c0_7 = arith.constant 0 : index
    %6 = vector.load %arg8[%c0_6, %c0_7] : memref<1x4xf32, #tpu.memory_space<vmem>>, vector<1x4xf32>
    %c0_8 = arith.constant 0 : index
    %c0_9 = arith.constant 0 : index
    %7 = vector.load %arg7[%c0_8, %c0_9] : memref<4x32xf32, #tpu.memory_space<vmem>>, vector<4x32xf32>
    %c0_10 = arith.constant 0 : index
    %c0_11 = arith.constant 0 : index
    %8 = vector.load %arg10[%c0_10, %c0_11] : memref<8x32xf32, #tpu.memory_space<vmem>>, vector<8x32xf32>
    %c0_i32_12 = arith.constant 0 : i32
    %9 = math.tanh %8 : vector<8x32xf32>
    %cst = arith.constant dense<0.000000e+00> : vector<8x32xf32>
    %10 = tpu.matmul %9, %3, %cst {dimension_numbers = #tpu.dot_dimension_numbers<[1], [0], [0], [1], [0, 0, 1, 1], [], []>} : vector<8x32xf32>, vector<32x32xf32>, vector<8x32xf32> -> vector<8x32xf32>
    %11 = vector.broadcast %5 : vector<1x32xf32> to vector<8x32xf32>
    %12 = arith.addf %10, %11 : vector<8x32xf32>
    %cst_13 = arith.constant 5.000000e-01 : f32
    %13 = vector.broadcast %cst_13 : f32 to vector<8x32xf32>
    %14 = arith.mulf %13, %8 : vector<8x32xf32>
    %cst_14 = arith.constant 5.000000e-01 : f32
    %15 = vector.broadcast %cst_14 : f32 to vector<8x32xf32>
    %16 = arith.mulf %15, %12 : vector<8x32xf32>
    %17 = arith.addf %14, %16 : vector<8x32xf32>
    %18 = math.tanh %17 : vector<8x32xf32>
    %cst_15 = arith.constant dense<0.000000e+00> : vector<8x4xf32>
    %19 = tpu.matmul %18, %4, %cst_15 {dimension_numbers = #tpu.dot_dimension_numbers<[1], [0], [0], [1], [0, 0, 1, 1], [], []>} : vector<8x32xf32>, vector<32x4xf32>, vector<8x4xf32> -> vector<8x4xf32>
    %20 = vector.broadcast %6 : vector<1x4xf32> to vector<8x4xf32>
    %21 = arith.addf %19, %20 : vector<8x4xf32>
    %22 = arith.index_cast %c0_i32_12 : i32 to index
    %c0_16 = arith.constant 0 : index
    %c0_17 = arith.constant 0 : index
    %23 = vector.load %arg2[%22, %c0_16, %c0_17] : memref<8x8x4xf32, #tpu.memory_space<vmem>>, vector<1x8x4xf32>
    %24 = vector.shape_cast %23 : vector<1x8x4xf32> to vector<8x4xf32>
    %25 = arith.subf %21, %24 : vector<8x4xf32>
    %26 = arith.index_cast %c0_i32_12 : i32 to index
    %c0_18 = arith.constant 0 : index
    %c0_19 = arith.constant 0 : index
    %27 = vector.load %arg9[%26, %c0_18, %c0_19] : memref<8x8x4xf32, #tpu.memory_space<vmem>>, vector<1x8x4xf32>
    %28 = vector.shape_cast %27 : vector<1x8x4xf32> to vector<8x4xf32>
    %29 = vector.shape_cast %25 : vector<8x4xf32> to vector<1x8x4xf32>
    tpu.vector_store %arg9[%26, %c0_18, %c0_19], %29 {strides = array<i32>} : memref<8x8x4xf32, #tpu.memory_space<vmem>>, vector<1x8x4xf32>,
    %cst_20 = arith.constant dense<0.000000e+00> : vector<8x32xf32>
    %30 = tpu.matmul %25, %7, %cst_20 {dimension_numbers = #tpu.dot_dimension_numbers<[1], [0], [0], [1], [0, 0, 1, 1], [], []>} : vector<8x4xf32>, vector<4x32xf32>, vector<8x32xf32> -> vector<8x32xf32>
    %31 = arith.mulf %18, %18 : vector<8x32xf32>
    %cst_21 = arith.constant 1.000000e+00 : f32
    %32 = vector.broadcast %cst_21 : f32 to vector<8x32xf32>
    %33 = arith.subf %32, %31 : vector<8x32xf32>
    %cst_22 = arith.constant 1.000000e-01 : f32
    %34 = vector.broadcast %cst_22 : f32 to vector<8x32xf32>
    %35 = arith.mulf %34, %33 : vector<8x32xf32>
    %36 = arith.mulf %35, %30 : vector<8x32xf32>
    %37 = arith.subf %17, %36 : vector<8x32xf32>
    %c1_i32 = arith.constant 1 : i32
    %38 = math.tanh %37 : vector<8x32xf32>
    %cst_23 = arith.constant dense<0.000000e+00> : vector<8x32xf32>
    %39 = tpu.matmul %38, %3, %cst_23 {dimension_numbers = #tpu.dot_dimension_numbers<[1], [0], [0], [1], [0, 0, 1, 1], [], []>} : vector<8x32xf32>, vector<32x32xf32>, vector<8x32xf32> -> vector<8x32xf32>
    %40 = vector.broadcast %5 : vector<1x32xf32> to vector<8x32xf32>
    %41 = arith.addf %39, %40 : vector<8x32xf32>
    %cst_24 = arith.constant 5.000000e-01 : f32
    %42 = vector.broadcast %cst_24 : f32 to vector<8x32xf32>
    %43 = arith.mulf %42, %37 : vector<8x32xf32>
    %cst_25 = arith.constant 5.000000e-01 : f32
    %44 = vector.broadcast %cst_25 : f32 to vector<8x32xf32>
    %45 = arith.mulf %44, %41 : vector<8x32xf32>
    %46 = arith.addf %43, %45 : vector<8x32xf32>
    %47 = math.tanh %46 : vector<8x32xf32>
    %cst_26 = arith.constant dense<0.000000e+00> : vector<8x4xf32>
    %48 = tpu.matmul %47, %4, %cst_26 {dimension_numbers = #tpu.dot_dimension_numbers<[1], [0], [0], [1], [0, 0, 1, 1], [], []>} : vector<8x32xf32>, vector<32x4xf32>, vector<8x4xf32> -> vector<8x4xf32>
    %49 = vector.broadcast %6 : vector<1x4xf32> to vector<8x4xf32>
    %50 = arith.addf %48, %49 : vector<8x4xf32>
    %51 = arith.index_cast %c1_i32 : i32 to index
    %c0_27 = arith.constant 0 : index
    %c0_28 = arith.constant 0 : index
    %52 = vector.load %arg2[%51, %c0_27, %c0_28] : memref<8x8x4xf32, #tpu.memory_space<vmem>>, vector<1x8x4xf32>
    %53 = vector.shape_cast %52 : vector<1x8x4xf32> to vector<8x4xf32>
    %54 = arith.subf %50, %53 : vector<8x4xf32>
    %55 = arith.index_cast %c1_i32 : i32 to index
    %c0_29 = arith.constant 0 : index
    %c0_30 = arith.constant 0 : index
    %56 = vector.load %arg9[%55, %c0_29, %c0_30] : memref<8x8x4xf32, #tpu.memory_space<vmem>>, vector<1x8x4xf32>
    %57 = vector.shape_cast %56 : vector<1x8x4xf32> to vector<8x4xf32>
    %58 = vector.shape_cast %54 : vector<8x4xf32> to vector<1x8x4xf32>
    tpu.vector_store %arg9[%55, %c0_29, %c0_30], %58 {strides = array<i32>} : memref<8x8x4xf32, #tpu.memory_space<vmem>>, vector<1x8x4xf32>,
    %cst_31 = arith.constant dense<0.000000e+00> : vector<8x32xf32>
    %59 = tpu.matmul %54, %7, %cst_31 {dimension_numbers = #tpu.dot_dimension_numbers<[1], [0], [0], [1], [0, 0, 1, 1], [], []>} : vector<8x4xf32>, vector<4x32xf32>, vector<8x32xf32> -> vector<8x32xf32>
    %60 = arith.mulf %47, %47 : vector<8x32xf32>
    %cst_32 = arith.constant 1.000000e+00 : f32
    %61 = vector.broadcast %cst_32 : f32 to vector<8x32xf32>
    %62 = arith.subf %61, %60 : vector<8x32xf32>
    %cst_33 = arith.constant 1.000000e-01 : f32
    %63 = vector.broadcast %cst_33 : f32 to vector<8x32xf32>
    %64 = arith.mulf %63, %62 : vector<8x32xf32>
    %65 = arith.mulf %64, %59 : vector<8x32xf32>
    %66 = arith.subf %46, %65 : vector<8x32xf32>
    %c2_i32 = arith.constant 2 : i32
    %67 = math.tanh %66 : vector<8x32xf32>
    %cst_34 = arith.constant dense<0.000000e+00> : vector<8x32xf32>
    %68 = tpu.matmul %67, %3, %cst_34 {dimension_numbers = #tpu.dot_dimension_numbers<[1], [0], [0], [1], [0, 0, 1, 1], [], []>} : vector<8x32xf32>, vector<32x32xf32>, vector<8x32xf32> -> vector<8x32xf32>
    %69 = vector.broadcast %5 : vector<1x32xf32> to vector<8x32xf32>
    %70 = arith.addf %68, %69 : vector<8x32xf32>
    %cst_35 = arith.constant 5.000000e-01 : f32
    %71 = vector.broadcast %cst_35 : f32 to vector<8x32xf32>
    %72 = arith.mulf %71, %66 : vector<8x32xf32>
    %cst_36 = arith.constant 5.000000e-01 : f32
    %73 = vector.broadcast %cst_36 : f32 to vector<8x32xf32>
    %74 = arith.mulf %73, %70 : vector<8x32xf32>
    %75 = arith.addf %72, %74 : vector<8x32xf32>
    %76 = math.tanh %75 : vector<8x32xf32>
    %cst_37 = arith.constant dense<0.000000e+00> : vector<8x4xf32>
    %77 = tpu.matmul %76, %4, %cst_37 {dimension_numbers = #tpu.dot_dimension_numbers<[1], [0], [0], [1], [0, 0, 1, 1], [], []>} : vector<8x32xf32>, vector<32x4xf32>, vector<8x4xf32> -> vector<8x4xf32>
    %78 = vector.broadcast %6 : vector<1x4xf32> to vector<8x4xf32>
    %79 = arith.addf %77, %78 : vector<8x4xf32>
    %80 = arith.index_cast %c2_i32 : i32 to index
    %c0_38 = arith.constant 0 : index
    %c0_39 = arith.constant 0 : index
    %81 = vector.load %arg2[%80, %c0_38, %c0_39] : memref<8x8x4xf32, #tpu.memory_space<vmem>>, vector<1x8x4xf32>
    %82 = vector.shape_cast %81 : vector<1x8x4xf32> to vector<8x4xf32>
    %83 = arith.subf %79, %82 : vector<8x4xf32>
    %84 = arith.index_cast %c2_i32 : i32 to index
    %c0_40 = arith.constant 0 : index
    %c0_41 = arith.constant 0 : index
    %85 = vector.load %arg9[%84, %c0_40, %c0_41] : memref<8x8x4xf32, #tpu.memory_space<vmem>>, vector<1x8x4xf32>
    %86 = vector.shape_cast %85 : vector<1x8x4xf32> to vector<8x4xf32>
    %87 = vector.shape_cast %83 : vector<8x4xf32> to vector<1x8x4xf32>
    tpu.vector_store %arg9[%84, %c0_40, %c0_41], %87 {strides = array<i32>} : memref<8x8x4xf32, #tpu.memory_space<vmem>>, vector<1x8x4xf32>,
    %cst_42 = arith.constant dense<0.000000e+00> : vector<8x32xf32>
    %88 = tpu.matmul %83, %7, %cst_42 {dimension_numbers = #tpu.dot_dimension_numbers<[1], [0], [0], [1], [0, 0, 1, 1], [], []>} : vector<8x4xf32>, vector<4x32xf32>, vector<8x32xf32> -> vector<8x32xf32>
    %89 = arith.mulf %76, %76 : vector<8x32xf32>
    %cst_43 = arith.constant 1.000000e+00 : f32
    %90 = vector.broadcast %cst_43 : f32 to vector<8x32xf32>
    %91 = arith.subf %90, %89 : vector<8x32xf32>
    %cst_44 = arith.constant 1.000000e-01 : f32
    %92 = vector.broadcast %cst_44 : f32 to vector<8x32xf32>
    %93 = arith.mulf %92, %91 : vector<8x32xf32>
    %94 = arith.mulf %93, %88 : vector<8x32xf32>
    %95 = arith.subf %75, %94 : vector<8x32xf32>
    %c3_i32 = arith.constant 3 : i32
    %96 = math.tanh %95 : vector<8x32xf32>
    %cst_45 = arith.constant dense<0.000000e+00> : vector<8x32xf32>
    %97 = tpu.matmul %96, %3, %cst_45 {dimension_numbers = #tpu.dot_dimension_numbers<[1], [0], [0], [1], [0, 0, 1, 1], [], []>} : vector<8x32xf32>, vector<32x32xf32>, vector<8x32xf32> -> vector<8x32xf32>
    %98 = vector.broadcast %5 : vector<1x32xf32> to vector<8x32xf32>
    %99 = arith.addf %97, %98 : vector<8x32xf32>
    %cst_46 = arith.constant 5.000000e-01 : f32
    %100 = vector.broadcast %cst_46 : f32 to vector<8x32xf32>
    %101 = arith.mulf %100, %95 : vector<8x32xf32>
    %cst_47 = arith.constant 5.000000e-01 : f32
    %102 = vector.broadcast %cst_47 : f32 to vector<8x32xf32>
    %103 = arith.mulf %102, %99 : vector<8x32xf32>
    %104 = arith.addf %101, %103 : vector<8x32xf32>
    %105 = math.tanh %104 : vector<8x32xf32>
    %cst_48 = arith.constant dense<0.000000e+00> : vector<8x4xf32>
    %106 = tpu.matmul %105, %4, %cst_48 {dimension_numbers = #tpu.dot_dimension_numbers<[1], [0], [0], [1], [0, 0, 1, 1], [], []>} : vector<8x32xf32>, vector<32x4xf32>, vector<8x4xf32> -> vector<8x4xf32>
    %107 = vector.broadcast %6 : vector<1x4xf32> to vector<8x4xf32>
    %108 = arith.addf %106, %107 : vector<8x4xf32>
    %109 = arith.index_cast %c3_i32 : i32 to index
    %c0_49 = arith.constant 0 : index
    %c0_50 = arith.constant 0 : index
    %110 = vector.load %arg2[%109, %c0_49, %c0_50] : memref<8x8x4xf32, #tpu.memory_space<vmem>>, vector<1x8x4xf32>
    %111 = vector.shape_cast %110 : vector<1x8x4xf32> to vector<8x4xf32>
    %112 = arith.subf %108, %111 : vector<8x4xf32>
    %113 = arith.index_cast %c3_i32 : i32 to index
    %c0_51 = arith.constant 0 : index
    %c0_52 = arith.constant 0 : index
    %114 = vector.load %arg9[%113, %c0_51, %c0_52] : memref<8x8x4xf32, #tpu.memory_space<vmem>>, vector<1x8x4xf32>
    %115 = vector.shape_cast %114 : vector<1x8x4xf32> to vector<8x4xf32>
    %116 = vector.shape_cast %112 : vector<8x4xf32> to vector<1x8x4xf32>
    tpu.vector_store %arg9[%113, %c0_51, %c0_52], %116 {strides = array<i32>} : memref<8x8x4xf32, #tpu.memory_space<vmem>>, vector<1x8x4xf32>,
    %cst_53 = arith.constant dense<0.000000e+00> : vector<8x32xf32>
    %117 = tpu.matmul %112, %7, %cst_53 {dimension_numbers = #tpu.dot_dimension_numbers<[1], [0], [0], [1], [0, 0, 1, 1], [], []>} : vector<8x4xf32>, vector<4x32xf32>, vector<8x32xf32> -> vector<8x32xf32>
    %118 = arith.mulf %105, %105 : vector<8x32xf32>
    %cst_54 = arith.constant 1.000000e+00 : f32
    %119 = vector.broadcast %cst_54 : f32 to vector<8x32xf32>
    %120 = arith.subf %119, %118 : vector<8x32xf32>
    %cst_55 = arith.constant 1.000000e-01 : f32
    %121 = vector.broadcast %cst_55 : f32 to vector<8x32xf32>
    %122 = arith.mulf %121, %120 : vector<8x32xf32>
    %123 = arith.mulf %122, %117 : vector<8x32xf32>
    %124 = arith.subf %104, %123 : vector<8x32xf32>
    %c4_i32 = arith.constant 4 : i32
    %125 = math.tanh %124 : vector<8x32xf32>
    %cst_56 = arith.constant dense<0.000000e+00> : vector<8x32xf32>
    %126 = tpu.matmul %125, %3, %cst_56 {dimension_numbers = #tpu.dot_dimension_numbers<[1], [0], [0], [1], [0, 0, 1, 1], [], []>} : vector<8x32xf32>, vector<32x32xf32>, vector<8x32xf32> -> vector<8x32xf32>
    %127 = vector.broadcast %5 : vector<1x32xf32> to vector<8x32xf32>
    %128 = arith.addf %126, %127 : vector<8x32xf32>
    %cst_57 = arith.constant 5.000000e-01 : f32
    %129 = vector.broadcast %cst_57 : f32 to vector<8x32xf32>
    %130 = arith.mulf %129, %124 : vector<8x32xf32>
    %cst_58 = arith.constant 5.000000e-01 : f32
    %131 = vector.broadcast %cst_58 : f32 to vector<8x32xf32>
    %132 = arith.mulf %131, %128 : vector<8x32xf32>
    %133 = arith.addf %130, %132 : vector<8x32xf32>
    %134 = math.tanh %133 : vector<8x32xf32>
    %cst_59 = arith.constant dense<0.000000e+00> : vector<8x4xf32>
    %135 = tpu.matmul %134, %4, %cst_59 {dimension_numbers = #tpu.dot_dimension_numbers<[1], [0], [0], [1], [0, 0, 1, 1], [], []>} : vector<8x32xf32>, vector<32x4xf32>, vector<8x4xf32> -> vector<8x4xf32>
    %136 = vector.broadcast %6 : vector<1x4xf32> to vector<8x4xf32>
    %137 = arith.addf %135, %136 : vector<8x4xf32>
    %138 = arith.index_cast %c4_i32 : i32 to index
    %c0_60 = arith.constant 0 : index
    %c0_61 = arith.constant 0 : index
    %139 = vector.load %arg2[%138, %c0_60, %c0_61] : memref<8x8x4xf32, #tpu.memory_space<vmem>>, vector<1x8x4xf32>
    %140 = vector.shape_cast %139 : vector<1x8x4xf32> to vector<8x4xf32>
    %141 = arith.subf %137, %140 : vector<8x4xf32>
    %142 = arith.index_cast %c4_i32 : i32 to index
    %c0_62 = arith.constant 0 : index
    %c0_63 = arith.constant 0 : index
    %143 = vector.load %arg9[%142, %c0_62, %c0_63] : memref<8x8x4xf32, #tpu.memory_space<vmem>>, vector<1x8x4xf32>
    %144 = vector.shape_cast %143 : vector<1x8x4xf32> to vector<8x4xf32>
    %145 = vector.shape_cast %141 : vector<8x4xf32> to vector<1x8x4xf32>
    tpu.vector_store %arg9[%142, %c0_62, %c0_63], %145 {strides = array<i32>} : memref<8x8x4xf32, #tpu.memory_space<vmem>>, vector<1x8x4xf32>,
    %cst_64 = arith.constant dense<0.000000e+00> : vector<8x32xf32>
    %146 = tpu.matmul %141, %7, %cst_64 {dimension_numbers = #tpu.dot_dimension_numbers<[1], [0], [0], [1], [0, 0, 1, 1], [], []>} : vector<8x4xf32>, vector<4x32xf32>, vector<8x32xf32> -> vector<8x32xf32>
    %147 = arith.mulf %134, %134 : vector<8x32xf32>
    %cst_65 = arith.constant 1.000000e+00 : f32
    %148 = vector.broadcast %cst_65 : f32 to vector<8x32xf32>
    %149 = arith.subf %148, %147 : vector<8x32xf32>
    %cst_66 = arith.constant 1.000000e-01 : f32
    %150 = vector.broadcast %cst_66 : f32 to vector<8x32xf32>
    %151 = arith.mulf %150, %149 : vector<8x32xf32>
    %152 = arith.mulf %151, %146 : vector<8x32xf32>
    %153 = arith.subf %133, %152 : vector<8x32xf32>
    %c5_i32 = arith.constant 5 : i32
    %154 = math.tanh %153 : vector<8x32xf32>
    %cst_67 = arith.constant dense<0.000000e+00> : vector<8x32xf32>
    %155 = tpu.matmul %154, %3, %cst_67 {dimension_numbers = #tpu.dot_dimension_numbers<[1], [0], [0], [1], [0, 0, 1, 1], [], []>} : vector<8x32xf32>, vector<32x32xf32>, vector<8x32xf32> -> vector<8x32xf32>
    %156 = vector.broadcast %5 : vector<1x32xf32> to vector<8x32xf32>
    %157 = arith.addf %155, %156 : vector<8x32xf32>
    %cst_68 = arith.constant 5.000000e-01 : f32
    %158 = vector.broadcast %cst_68 : f32 to vector<8x32xf32>
    %159 = arith.mulf %158, %153 : vector<8x32xf32>
    %cst_69 = arith.constant 5.000000e-01 : f32
    %160 = vector.broadcast %cst_69 : f32 to vector<8x32xf32>
    %161 = arith.mulf %160, %157 : vector<8x32xf32>
    %162 = arith.addf %159, %161 : vector<8x32xf32>
    %163 = math.tanh %162 : vector<8x32xf32>
    %cst_70 = arith.constant dense<0.000000e+00> : vector<8x4xf32>
    %164 = tpu.matmul %163, %4, %cst_70 {dimension_numbers = #tpu.dot_dimension_numbers<[1], [0], [0], [1], [0, 0, 1, 1], [], []>} : vector<8x32xf32>, vector<32x4xf32>, vector<8x4xf32> -> vector<8x4xf32>
    %165 = vector.broadcast %6 : vector<1x4xf32> to vector<8x4xf32>
    %166 = arith.addf %164, %165 : vector<8x4xf32>
    %167 = arith.index_cast %c5_i32 : i32 to index
    %c0_71 = arith.constant 0 : index
    %c0_72 = arith.constant 0 : index
    %168 = vector.load %arg2[%167, %c0_71, %c0_72] : memref<8x8x4xf32, #tpu.memory_space<vmem>>, vector<1x8x4xf32>
    %169 = vector.shape_cast %168 : vector<1x8x4xf32> to vector<8x4xf32>
    %170 = arith.subf %166, %169 : vector<8x4xf32>
    %171 = arith.index_cast %c5_i32 : i32 to index
    %c0_73 = arith.constant 0 : index
    %c0_74 = arith.constant 0 : index
    %172 = vector.load %arg9[%171, %c0_73, %c0_74] : memref<8x8x4xf32, #tpu.memory_space<vmem>>, vector<1x8x4xf32>
    %173 = vector.shape_cast %172 : vector<1x8x4xf32> to vector<8x4xf32>
    %174 = vector.shape_cast %170 : vector<8x4xf32> to vector<1x8x4xf32>
    tpu.vector_store %arg9[%171, %c0_73, %c0_74], %174 {strides = array<i32>} : memref<8x8x4xf32, #tpu.memory_space<vmem>>, vector<1x8x4xf32>,
    %cst_75 = arith.constant dense<0.000000e+00> : vector<8x32xf32>
    %175 = tpu.matmul %170, %7, %cst_75 {dimension_numbers = #tpu.dot_dimension_numbers<[1], [0], [0], [1], [0, 0, 1, 1], [], []>} : vector<8x4xf32>, vector<4x32xf32>, vector<8x32xf32> -> vector<8x32xf32>
    %176 = arith.mulf %163, %163 : vector<8x32xf32>
    %cst_76 = arith.constant 1.000000e+00 : f32
    %177 = vector.broadcast %cst_76 : f32 to vector<8x32xf32>
    %178 = arith.subf %177, %176 : vector<8x32xf32>
    %cst_77 = arith.constant 1.000000e-01 : f32
    %179 = vector.broadcast %cst_77 : f32 to vector<8x32xf32>
    %180 = arith.mulf %179, %178 : vector<8x32xf32>
    %181 = arith.mulf %180, %175 : vector<8x32xf32>
    %182 = arith.subf %162, %181 : vector<8x32xf32>
    %c6_i32 = arith.constant 6 : i32
    %183 = math.tanh %182 : vector<8x32xf32>
    %cst_78 = arith.constant dense<0.000000e+00> : vector<8x32xf32>
    %184 = tpu.matmul %183, %3, %cst_78 {dimension_numbers = #tpu.dot_dimension_numbers<[1], [0], [0], [1], [0, 0, 1, 1], [], []>} : vector<8x32xf32>, vector<32x32xf32>, vector<8x32xf32> -> vector<8x32xf32>
    %185 = vector.broadcast %5 : vector<1x32xf32> to vector<8x32xf32>
    %186 = arith.addf %184, %185 : vector<8x32xf32>
    %cst_79 = arith.constant 5.000000e-01 : f32
    %187 = vector.broadcast %cst_79 : f32 to vector<8x32xf32>
    %188 = arith.mulf %187, %182 : vector<8x32xf32>
    %cst_80 = arith.constant 5.000000e-01 : f32
    %189 = vector.broadcast %cst_80 : f32 to vector<8x32xf32>
    %190 = arith.mulf %189, %186 : vector<8x32xf32>
    %191 = arith.addf %188, %190 : vector<8x32xf32>
    %192 = math.tanh %191 : vector<8x32xf32>
    %cst_81 = arith.constant dense<0.000000e+00> : vector<8x4xf32>
    %193 = tpu.matmul %192, %4, %cst_81 {dimension_numbers = #tpu.dot_dimension_numbers<[1], [0], [0], [1], [0, 0, 1, 1], [], []>} : vector<8x32xf32>, vector<32x4xf32>, vector<8x4xf32> -> vector<8x4xf32>
    %194 = vector.broadcast %6 : vector<1x4xf32> to vector<8x4xf32>
    %195 = arith.addf %193, %194 : vector<8x4xf32>
    %196 = arith.index_cast %c6_i32 : i32 to index
    %c0_82 = arith.constant 0 : index
    %c0_83 = arith.constant 0 : index
    %197 = vector.load %arg2[%196, %c0_82, %c0_83] : memref<8x8x4xf32, #tpu.memory_space<vmem>>, vector<1x8x4xf32>
    %198 = vector.shape_cast %197 : vector<1x8x4xf32> to vector<8x4xf32>
    %199 = arith.subf %195, %198 : vector<8x4xf32>
    %200 = arith.index_cast %c6_i32 : i32 to index
    %c0_84 = arith.constant 0 : index
    %c0_85 = arith.constant 0 : index
    %201 = vector.load %arg9[%200, %c0_84, %c0_85] : memref<8x8x4xf32, #tpu.memory_space<vmem>>, vector<1x8x4xf32>
    %202 = vector.shape_cast %201 : vector<1x8x4xf32> to vector<8x4xf32>
    %203 = vector.shape_cast %199 : vector<8x4xf32> to vector<1x8x4xf32>
    tpu.vector_store %arg9[%200, %c0_84, %c0_85], %203 {strides = array<i32>} : memref<8x8x4xf32, #tpu.memory_space<vmem>>, vector<1x8x4xf32>,
    %cst_86 = arith.constant dense<0.000000e+00> : vector<8x32xf32>
    %204 = tpu.matmul %199, %7, %cst_86 {dimension_numbers = #tpu.dot_dimension_numbers<[1], [0], [0], [1], [0, 0, 1, 1], [], []>} : vector<8x4xf32>, vector<4x32xf32>, vector<8x32xf32> -> vector<8x32xf32>
    %205 = arith.mulf %192, %192 : vector<8x32xf32>
    %cst_87 = arith.constant 1.000000e+00 : f32
    %206 = vector.broadcast %cst_87 : f32 to vector<8x32xf32>
    %207 = arith.subf %206, %205 : vector<8x32xf32>
    %cst_88 = arith.constant 1.000000e-01 : f32
    %208 = vector.broadcast %cst_88 : f32 to vector<8x32xf32>
    %209 = arith.mulf %208, %207 : vector<8x32xf32>
    %210 = arith.mulf %209, %204 : vector<8x32xf32>
    %211 = arith.subf %191, %210 : vector<8x32xf32>
    %c7_i32 = arith.constant 7 : i32
    %212 = math.tanh %211 : vector<8x32xf32>
    %cst_89 = arith.constant dense<0.000000e+00> : vector<8x32xf32>
    %213 = tpu.matmul %212, %3, %cst_89 {dimension_numbers = #tpu.dot_dimension_numbers<[1], [0], [0], [1], [0, 0, 1, 1], [], []>} : vector<8x32xf32>, vector<32x32xf32>, vector<8x32xf32> -> vector<8x32xf32>
    %214 = vector.broadcast %5 : vector<1x32xf32> to vector<8x32xf32>
    %215 = arith.addf %213, %214 : vector<8x32xf32>
    %cst_90 = arith.constant 5.000000e-01 : f32
    %216 = vector.broadcast %cst_90 : f32 to vector<8x32xf32>
    %217 = arith.mulf %216, %211 : vector<8x32xf32>
    %cst_91 = arith.constant 5.000000e-01 : f32
    %218 = vector.broadcast %cst_91 : f32 to vector<8x32xf32>
    %219 = arith.mulf %218, %215 : vector<8x32xf32>
    %220 = arith.addf %217, %219 : vector<8x32xf32>
    %221 = math.tanh %220 : vector<8x32xf32>
    %cst_92 = arith.constant dense<0.000000e+00> : vector<8x4xf32>
    %222 = tpu.matmul %221, %4, %cst_92 {dimension_numbers = #tpu.dot_dimension_numbers<[1], [0], [0], [1], [0, 0, 1, 1], [], []>} : vector<8x32xf32>, vector<32x4xf32>, vector<8x4xf32> -> vector<8x4xf32>
    %223 = vector.broadcast %6 : vector<1x4xf32> to vector<8x4xf32>
    %224 = arith.addf %222, %223 : vector<8x4xf32>
    %225 = arith.index_cast %c7_i32 : i32 to index
    %c0_93 = arith.constant 0 : index
    %c0_94 = arith.constant 0 : index
    %226 = vector.load %arg2[%225, %c0_93, %c0_94] : memref<8x8x4xf32, #tpu.memory_space<vmem>>, vector<1x8x4xf32>
    %227 = vector.shape_cast %226 : vector<1x8x4xf32> to vector<8x4xf32>
    %228 = arith.subf %224, %227 : vector<8x4xf32>
    %229 = arith.index_cast %c7_i32 : i32 to index
    %c0_95 = arith.constant 0 : index
    %c0_96 = arith.constant 0 : index
    %230 = vector.load %arg9[%229, %c0_95, %c0_96] : memref<8x8x4xf32, #tpu.memory_space<vmem>>, vector<1x8x4xf32>
    %231 = vector.shape_cast %230 : vector<1x8x4xf32> to vector<8x4xf32>
    %232 = vector.shape_cast %228 : vector<8x4xf32> to vector<1x8x4xf32>
    tpu.vector_store %arg9[%229, %c0_95, %c0_96], %232 {strides = array<i32>} : memref<8x8x4xf32, #tpu.memory_space<vmem>>, vector<1x8x4xf32>,
    %cst_97 = arith.constant dense<0.000000e+00> : vector<8x32xf32>
    %233 = tpu.matmul %228, %7, %cst_97 {dimension_numbers = #tpu.dot_dimension_numbers<[1], [0], [0], [1], [0, 0, 1, 1], [], []>} : vector<8x4xf32>, vector<4x32xf32>, vector<8x32xf32> -> vector<8x32xf32>
    %234 = arith.mulf %221, %221 : vector<8x32xf32>
    %cst_98 = arith.constant 1.000000e+00 : f32
    %235 = vector.broadcast %cst_98 : f32 to vector<8x32xf32>
    %236 = arith.subf %235, %234 : vector<8x32xf32>
    %cst_99 = arith.constant 1.000000e-01 : f32
    %237 = vector.broadcast %cst_99 : f32 to vector<8x32xf32>
    %238 = arith.mulf %237, %236 : vector<8x32xf32>
    %239 = arith.mulf %238, %233 : vector<8x32xf32>
    %240 = arith.subf %220, %239 : vector<8x32xf32>
    %c8_i32 = arith.constant 8 : i32
    %c0_100 = arith.constant 0 : index
    %c0_101 = arith.constant 0 : index
    %241 = vector.load %arg10[%c0_100, %c0_101] : memref<8x32xf32, #tpu.memory_space<vmem>>, vector<8x32xf32>
    tpu.vector_store %arg10[%c0_100, %c0_101], %240 {strides = array<i32>} : memref<8x32xf32, #tpu.memory_space<vmem>>, vector<8x32xf32>,
    return
  }
  func.func @transform_0(%arg0: i32, %arg1: i32) -> (i32, i32, i32) {
    %c0_i32 = arith.constant 0 : i32
    %c0_i32_0 = arith.constant 0 : i32
    return %arg1, %arg0, %c0_i32 : i32, i32, i32
  }
  func.func @transform_1(%arg0: i32, %arg1: i32) -> (i32, i32) {
    %c0_i32 = arith.constant 0 : i32
    %c0_i32_0 = arith.constant 0 : i32
    return %arg0, %c0_i32 : i32, i32
  }
  func.func @transform_2(%arg0: i32, %arg1: i32) -> (i32, i32) {
    %c0_i32 = arith.constant 0 : i32
    %c0_i32_0 = arith.constant 0 : i32
    %c0_i32_1 = arith.constant 0 : i32
    return %c0_i32, %c0_i32_0 : i32, i32
  }
  func.func @transform_3(%arg0: i32, %arg1: i32) -> (i32, i32) {
    %c0_i32 = arith.constant 0 : i32
    %c0_i32_0 = arith.constant 0 : i32
    %c0_i32_1 = arith.constant 0 : i32
    return %c0_i32, %c0_i32_0 : i32, i32
  }
  func.func @transform_4(%arg0: i32, %arg1: i32) -> (i32, i32) {
    %c0_i32 = arith.constant 0 : i32
    %c0_i32_0 = arith.constant 0 : i32
    %c0_i32_1 = arith.constant 0 : i32
    return %c0_i32, %c0_i32_0 : i32, i32
  }
  func.func @transform_5(%arg0: i32, %arg1: i32) -> (i32, i32) {
    %c0_i32 = arith.constant 0 : i32
    %c0_i32_0 = arith.constant 0 : i32
    %c0_i32_1 = arith.constant 0 : i32
    return %c0_i32, %c0_i32_0 : i32, i32
  }
  func.func @transform_6(%arg0: i32, %arg1: i32) -> (i32, i32) {
    %c0_i32 = arith.constant 0 : i32
    %c0_i32_0 = arith.constant 0 : i32
    %c0_i32_1 = arith.constant 0 : i32
    return %c0_i32, %c0_i32_0 : i32, i32
  }
  func.func @transform_7(%arg0: i32, %arg1: i32) -> (i32, i32, i32) {
    %c0_i32 = arith.constant 0 : i32
    %c0_i32_0 = arith.constant 0 : i32
    return %arg1, %arg0, %c0_i32 : i32, i32, i32
  }
}

</mosaic_0001>

<llo_original>
// kernel: tpu_custom_call.1
$region0: #{tpu_custom_call.1}
  #allocation0 [shape = 'u32[]', space=smem, size = 0x4, offset = 0x4, fixed_abs, tag = 'smem constant byte address 0x4 - core index']
  #allocation1 [shape = 'u32[144,128]{1,0:T(1,128)}', space=vmem, size = 0x12000, scoped, tag = 'internal scratch']
  #allocation2 [shape = 'f32[8,32]{1,0:T(8,128)}', space=vmem, size = 0x1000, scoped, tag = 'scratch operand']
  %s0 = inlined_call_operand.vmem [shape: f32[8,8,4], index: 0, kind: input, shape index: {}]
  %s1 = inlined_call_operand.vmem [shape: f32[8,32], index: 1, kind: input, shape index: {}]
  %s2 = inlined_call_operand.vmem [shape: f32[32,32], index: 2, kind: input, shape index: {}]
  %s3 = inlined_call_operand.vmem [shape: f32[1,32], index: 3, kind: input, shape index: {}]
  %s4 = inlined_call_operand.vmem [shape: f32[32,4], index: 4, kind: input, shape index: {}]
  %s5 = inlined_call_operand.vmem [shape: f32[4,32], index: 5, kind: input, shape index: {}]
  %s6 = inlined_call_operand.vmem [shape: f32[1,4], index: 6, kind: input, shape index: {}]
  %s7 = inlined_call_operand.vmem [shape: f32[8,8,4], index: 7, kind: output, shape index: {}]
  %s8 = sld [smem:[#allocation0]]
  $region42: #{tpu_custom_call.1} parent=0
    _
  %s10 = ssub.s32 1, %s8
  %s11 = scalar_select 0, %s10, %s8
  // Predicated region
  $region2: #{tpu_custom_call.1} parent=0 // pred_check
    _
  $region3: #{tpu_custom_call.1} parent=0 // pred_check_branch
    %13 = sbr.rel (0) target = $region5
  $region4: #{tpu_custom_call.1} parent=0 // pred_region
    _
  $region5: #{tpu_custom_call.1} parent=0 // pred_fallthru
    _
  // Predicated region
  $region6: #{tpu_custom_call.1} parent=0 // pred_check
    _
  $region7: #{tpu_custom_call.1} parent=0 // pred_check_branch
    %15 = sbr.rel (0) target = $region9
  $region8: #{tpu_custom_call.1} parent=0 // pred_region
    _
  $region9: #{tpu_custom_call.1} parent=0 // pred_fallthru
    _
  // Predicated region
  $region10: #{tpu_custom_call.1} parent=0 // pred_check
    _
  $region11: #{tpu_custom_call.1} parent=0 // pred_check_branch
    %17 = sbr.rel (0) target = $region13
  $region12: #{tpu_custom_call.1} parent=0 // pred_region
    _
  $region13: #{tpu_custom_call.1} parent=0 // pred_fallthru
    _
  // Predicated region
  $region14: #{tpu_custom_call.1} parent=0 // pred_check
    _
  $region15: #{tpu_custom_call.1} parent=0 // pred_check_branch
    %19 = sbr.rel (0) target = $region17
  $region16: #{tpu_custom_call.1} parent=0 // pred_region
    _
  $region17: #{tpu_custom_call.1} parent=0 // pred_fallthru
    _
  // Predicated region
  $region18: #{tpu_custom_call.1} parent=0 // pred_check
    _
  $region19: #{tpu_custom_call.1} parent=0 // pred_check_branch
    %21 = sbr.rel (0) target = $region21
  $region20: #{tpu_custom_call.1} parent=0 // pred_region
    _
  $region21: #{tpu_custom_call.1} parent=0 // pred_fallthru
    _
  // Predicated region
  $region22: #{tpu_custom_call.1} parent=0 // pred_check
    _
  $region23: #{tpu_custom_call.1} parent=0 // pred_check_branch
    %23 = sbr.rel (0) target = $region25
  $region24: #{tpu_custom_call.1} parent=0 // pred_region
    _
  $region25: #{tpu_custom_call.1} parent=0 // pred_fallthru
    _
  // Predicated region
  $region26: #{tpu_custom_call.1} parent=0 // pred_check
    _
  $region27: #{tpu_custom_call.1} parent=0 // pred_check_branch
    %25 = sbr.rel (0) target = $region29
  $region28: #{tpu_custom_call.1} parent=0 // pred_region
    _
  $region29: #{tpu_custom_call.1} parent=0 // pred_fallthru
    _
  %p26 = scmp.eq.s32.totalorder 0, 0
  // Predicated region
  $region30: #{tpu_custom_call.1} parent=0 // pred_check
    %p27 = pneg %p26
  $region31: #{tpu_custom_call.1} parent=0 // pred_check_branch
    %29 = sbr.rel (%p27) target = $region33
  $region32: #{tpu_custom_call.1} parent=0 // pred_region
    %v30 = vld [vmem:[%s1] sm:$0xff]
    %vm31 = vcmask 261120
    %32 = vst.msk [vmem:[#allocation2] sm:$0xff] %vm31, %v30
  $region33: #{tpu_custom_call.1} parent=0 // pred_fallthru
    _
  %v33 = vld [vmem:[%s2] sm:$0xff]
  %v34 = vld [vmem:[%s2 + $0x8] sm:$0xff]
  %v35 = vld [vmem:[%s2 + $0x10] sm:$0xff]
  %v36 = vld [vmem:[%s2 + $0x18] sm:$0xff]
  %v37 = vld [vmem:[%s4] sm:$0xff]
  %v38 = vld [vmem:[%s4 + $0x8] sm:$0xff]
  %v39 = vld [vmem:[%s4 + $0x10] sm:$0xff]
  %v40 = vld [vmem:[%s4 + $0x18] sm:$0xff]
  %v41 = vld [vmem:[%s3] sm:$0x1]
  %v42 = vld [vmem:[%s6] sm:$0x1]
  %v43 = vld [vmem:[%s5] sm:$0xf]
  %v44 = vld [vmem:[#allocation2] sm:$0xff]
  %v45 = vtanh.pop %v44
  %v47 = vlaneseq
  %v48 = vshrl.u32 %v47, 7
  %v49 = vsub.s32 0, %v48
  %v50 = vrot.slane %v41, %v49
  %vm52 = vcmask 261120
  %v54 = vsel %vm52, %v45, 0
  %56 = vmatprep.subr.mxu0 0.0
  %57 = vmatpush1.msra.mxu0 %v33
  %58 = vmatprep.subr.mxu0 0.0
  %59 = vmatpush1.msra.mxu0 %v34
  %60 = vmatprep.subr.mxu0 0.0
  %61 = vmatpush1.msra.mxu0 %v35
  %62 = vmatprep.subr.mxu0 0.0
  %63 = vmatpush1.msra.mxu0 %v36
  %64 = vmatprep.subr.mxu0 0.0
  %65 = vmatpush1.msra.mxu0 0.0
  %66 = vmatprep.subr.mxu0 0.0
  %67 = vmatpush1.msra.mxu0 0.0
  %68 = vmatprep.subr.mxu0 0.0
  %69 = vmatpush1.msra.mxu0 0.0
  %70 = vmatprep.subr.mxu0 0.0
  %71 = vmatpush1.msra.mxu0 0.0
  %72 = vmatprep.subr.mxu0 0.0
  %73 = vmatpush1.msra.mxu0 0.0
  %74 = vmatprep.subr.mxu0 0.0
  %75 = vmatpush1.msra.mxu0 0.0
  %76 = vmatprep.subr.mxu0 0.0
  %77 = vmatpush1.msra.mxu0 0.0
  %78 = vmatprep.subr.mxu0 0.0
  %79 = vmatpush1.msra.mxu0 0.0
  %80 = vmatprep.subr.mxu0 0.0
  %81 = vmatpush1.msra.mxu0 0.0
  %82 = vmatprep.subr.mxu0 0.0
  %83 = vmatpush1.msra.mxu0 0.0
  %84 = vmatprep.subr.mxu0 0.0
  %85 = vmatpush1.msra.mxu0 0.0
  %86 = vmatprep.subr.mxu0 0.0
  %87 = vmatpush1.msra.mxu0 0.0
  %88 = vmatprep.subr.mxu0 0.0
  %89 = vmatpush1.msra.mxu0 0.0
  %90 = vmatprep.subr.mxu0 0.0
  %91 = vmatpush1.msra.mxu0 0.0
  %92 = vmatprep.subr.mxu0 0.0
  %93 = vmatpush1.msra.mxu0 0.0
  %94 = vmatprep.subr.mxu0 0.0
  %95 = vmatpush1.msra.mxu0 0.0
  %96 = vmatprep.subr.mxu0 0.0
  %97 = vmatpush1.msra.mxu0 0.0
  %98 = vmatprep.subr.mxu0 0.0
  %99 = vmatpush1.msra.mxu0 0.0
  %100 = vmatprep.subr.mxu0 0.0
  %101 = vmatpush1.msra.mxu0 0.0
  %102 = vmatprep.subr.mxu0 0.0
  %103 = vmatpush1.msra.mxu0 0.0
  %104 = vmatprep.subr.mxu0 0.0
  %105 = vmatpush1.msra.mxu0 0.0
  %106 = vmatprep.subr.mxu0 0.0
  %107 = vmatpush1.msra.mxu0 0.0
  %108 = vmatprep.subr.mxu0 0.0
  %109 = vmatpush1.msra.mxu0 0.0
  %110 = vmatprep.subr.mxu0 0.0
  %111 = vmatpush1.msra.mxu0 0.0
  %112 = vmatprep.subr.mxu0 0.0
  %113 = vmatpush1.msra.mxu0 0.0
  %114 = vmatprep.subr.mxu0 0.0
  %115 = vmatpush1.msra.mxu0 0.0
  %116 = vmatprep.subr.mxu0 0.0
  %117 = vmatpush1.msra.mxu0 0.0
  %118 = vmatprep.subr.mxu0 0.0
  %119 = vmatpush1.msra.mxu0 0.0
  %120 = vmatprep.mubr.f32.mxu0 0.0
  %121 = vmatmul.mubr.f32.gmra.mrb[0].mxu0 %v54
  %v122 = vpop.f32.mrb[0].mxu0
  %v123 = vadd.f32 %v50, %v122
  %v124 = vpop.f32.mrb[0].mxu0
  %125 = vdwg.mxu0
  %v126 = vmul.f32 %v44, 0.5
  %v127 = vmul.f32 %v123, 0.5
  %v128 = vadd.f32 %v126, %v127
  %v129 = vtanh.pop %v128
  %v131 = vlaneseq
  %v132 = vshrl.u32 %v131, 7
  %v133 = vsub.s32 0, %v132
  %v134 = vrot.slane %v42, %v133
  %v137 = vsel %vm52, %v129, 0
  %139 = vmatprep.subr.mxu0 0.0
  %140 = vmatpush1.msra.mxu0 %v37
  %141 = vmatprep.subr.mxu0 0.0
  %142 = vmatpush1.msra.mxu0 %v38
  %143 = vmatprep.subr.mxu0 0.0
  %144 = vmatpush1.msra.mxu0 %v39
  %145 = vmatprep.subr.mxu0 0.0
  %146 = vmatpush1.msra.mxu0 %v40
  %147 = vmatprep.subr.mxu0 0.0
  %148 = vmatpush1.msra.mxu0 0.0
  %149 = vmatprep.subr.mxu0 0.0
  %150 = vmatpush1.msra.mxu0 0.0
  %151 = vmatprep.subr.mxu0 0.0
  %152 = vmatpush1.msra.mxu0 0.0
  %153 = vmatprep.subr.mxu0 0.0
  %154 = vmatpush1.msra.mxu0 0.0
  %155 = vmatprep.subr.mxu0 0.0
  %156 = vmatpush1.msra.mxu0 0.0
  %157 = vmatprep.subr.mxu0 0.0
  %158 = vmatpush1.msra.mxu0 0.0
  %159 = vmatprep.subr.mxu0 0.0
  %160 = vmatpush1.msra.mxu0 0.0
  %161 = vmatprep.subr.mxu0 0.0
  %162 = vmatpush1.msra.mxu0 0.0
  %163 = vmatprep.subr.mxu0 0.0
  %164 = vmatpush1.msra.mxu0 0.0
  %165 = vmatprep.subr.mxu0 0.0
  %166 = vmatpush1.msra.mxu0 0.0
  %167 = vmatprep.subr.mxu0 0.0
  %168 = vmatpush1.msra.mxu0 0.0
  %169 = vmatprep.subr.mxu0 0.0
  %170 = vmatpush1.msra.mxu0 0.0
  %171 = vmatprep.subr.mxu0 0.0
  %172 = vmatpush1.msra.mxu0 0.0
  %173 = vmatprep.subr.mxu0 0.0
  %174 = vmatpush1.msra.mxu0 0.0
  %175 = vmatprep.subr.mxu0 0.0
  %176 = vmatpush1.msra.mxu0 0.0
  %177 = vmatprep.subr.mxu0 0.0
  %178 = vmatpush1.msra.mxu0 0.0
  %179 = vmatprep.subr.mxu0 0.0
  %180 = vmatpush1.msra.mxu0 0.0
  %181 = vmatprep.subr.mxu0 0.0
  %182 = vmatpush1.msra.mxu0 0.0
  %183 = vmatprep.subr.mxu0 0.0
  %184 = vmatpush1.msra.mxu0 0.0
  %185 = vmatprep.subr.mxu0 0.0
  %186 = vmatpush1.msra.mxu0 0.0
  %187 = vmatprep.subr.mxu0 0.0
  %188 = vmatpush1.msra.mxu0 0.0
  %189 = vmatprep.subr.mxu0 0.0
  %190 = vmatpush1.msra.mxu0 0.0
  %191 = vmatprep.subr.mxu0 0.0
  %192 = vmatpush1.msra.mxu0 0.0
  %193 = vmatprep.subr.mxu0 0.0
  %194 = vmatpush1.msra.mxu0 0.0
  %195 = vmatprep.subr.mxu0 0.0
  %196 = vmatpush1.msra.mxu0 0.0
  %197 = vmatprep.subr.mxu0 0.0
  %198 = vmatpush1.msra.mxu0 0.0
  %199 = vmatprep.subr.mxu0 0.0
  %200 = vmatpush1.msra.mxu0 0.0
  %201 = vmatprep.subr.mxu0 0.0
  %202 = vmatpush1.msra.mxu0 0.0
  %203 = vmatprep.mubr.f32.mxu0 0.0
  %204 = vmatmul.mubr.f32.gmra.mrb[0].mxu0 %v137
  %v205 = vpop.f32.mrb[0].mxu0
  %v206 = vadd.f32 %v134, %v205
  %v207 = vpop.f32.mrb[0].mxu0
  %208 = vdwg.mxu0
  %v209 = vld [vmem:[%s0] sm:$0xff]
  %v210 = vsub.f32 %v206, %v209
  %vm211 = vcmask 31744
  %212 = vst.msk [vmem:[%s7] sm:$0xff] %vm211, %v210
  %v214 = vsel %vm211, %v210, 0
  %vm216 = vcmask 1043456
  %v218 = vsel %vm216, %v43, 0
  %220 = vmatprep.subr.mxu0 0.0
  %221 = vmatpush1.msra.mxu0 %v218
  %222 = vmatprep.subr.mxu0 0.0
  %223 = vmatpush1.msra.mxu0 0.0
  %224 = vmatprep.subr.mxu0 0.0
  %225 = vmatpush1.msra.mxu0 0.0
  %226 = vmatprep.subr.mxu0 0.0
  %227 = vmatpush1.msra.mxu0 0.0
  %228 = vmatprep.subr.mxu0 0.0
  %229 = vmatpush1.msra.mxu0 0.0
  %230 = vmatprep.subr.mxu0 0.0
  %231 = vmatpush1.msra.mxu0 0.0
  %232 = vmatprep.subr.mxu0 0.0
  %233 = vmatpush1.msra.mxu0 0.0
  %234 = vmatprep.subr.mxu0 0.0
  %235 = vmatpush1.msra.mxu0 0.0
  %236 = vmatprep.subr.mxu0 0.0
  %237 = vmatpush1.msra.mxu0 0.0
  %238 = vmatprep.subr.mxu0 0.0
  %239 = vmatpush1.msra.mxu0 0.0
  %240 = vmatprep.subr.mxu0 0.0
  %241 = vmatpush1.msra.mxu0 0.0
  %242 = vmatprep.subr.mxu0 0.0
  %243 = vmatpush1.msra.mxu0 0.0
  %244 = vmatprep.subr.mxu0 0.0
  %245 = vmatpush1.msra.mxu0 0.0
  %246 = vmatprep.subr.mxu0 0.0
  %247 = vmatpush1.msra.mxu0 0.0
  %248 = vmatprep.subr.mxu0 0.0
  %249 = vmatpush1.msra.mxu0 0.0
  %250 = vmatprep.subr.mxu0 0.0
  %251 = vmatpush1.msra.mxu0 0.0
  %252 = vmatprep.subr.mxu0 0.0
  %253 = vmatpush1.msra.mxu0 0.0
  %254 = vmatprep.subr.mxu0 0.0
  %255 = vmatpush1.msra.mxu0 0.0
  %256 = vmatprep.subr.mxu0 0.0
  %257 = vmatpush1.msra.mxu0 0.0
  %258 = vmatprep.subr.mxu0 0.0
  %259 = vmatpush1.msra.mxu0 0.0
  %260 = vmatprep.subr.mxu0 0.0
  %261 = vmatpush1.msra.mxu0 0.0
  %262 = vmatprep.subr.mxu0 0.0
  %263 = vmatpush1.msra.mxu0 0.0
  %264 = vmatprep.subr.mxu0 0.0
  %265 = vmatpush1.msra.mxu0 0.0
  %266 = vmatprep.subr.mxu0 0.0
  %267 = vmatpush1.msra.mxu0 0.0
  %268 = vmatprep.subr.mxu0 0.0
  %269 = vmatpush1.msra.mxu0 0.0
  %270 = vmatprep.subr.mxu0 0.0
  %271 = vmatpush1.msra.mxu0 0.0
  %272 = vmatprep.subr.mxu0 0.0
  %273 = vmatpush1.msra.mxu0 0.0
  %274 = vmatprep.subr.mxu0 0.0
  %275 = vmatpush1.msra.mxu0 0.0
  %276 = vmatprep.subr.mxu0 0.0
  %277 = vmatpush1.msra.mxu0 0.0
  %278 = vmatprep.subr.mxu0 0.0
  %279 = vmatpush1.msra.mxu0 0.0
  %280 = vmatprep.subr.mxu0 0.0
  %281 = vmatpush1.msra.mxu0 0.0
  %282 = vmatprep.subr.mxu0 0.0
  %283 = vmatpush1.msra.mxu0 0.0
  %284 = vmatprep.mubr.f32.mxu0 0.0
  %285 = vmatmul.mubr.f32.gmra.mrb[0].mxu0 %v214
  %v286 = vpop.f32.mrb[0].mxu0
  %v287 = vadd.f32 0.0, %v286
  %v288 = vpop.f32.mrb[0].mxu0
  %289 = vdwg.mxu0
  %v290 = vmul.f32 %v129, %v129
  %v291 = vsub.f32 1.0, %v290
  %v292 = vmul.f32 %v291, 0.1
  %v293 = vmul.f32 %v292, %v287
  %v294 = vsub.f32 %v128, %v293
  %v295 = vtanh.pop %v294
  %v297 = vsel %vm52, %v295, 0
  %299 = vmatprep.subr.mxu0 0.0
  %300 = vmatpush1.msra.mxu0 %v33
  %301 = vmatprep.subr.mxu0 0.0
  %302 = vmatpush1.msra.mxu0 %v34
  %303 = vmatprep.subr.mxu0 0.0
  %304 = vmatpush1.msra.mxu0 %v35
  %305 = vmatprep.subr.mxu0 0.0
  %306 = vmatpush1.msra.mxu0 %v36
  %307 = vmatprep.subr.mxu0 0.0
  %308 = vmatpush1.msra.mxu0 0.0
  %309 = vmatprep.subr.mxu0 0.0
  %310 = vmatpush1.msra.mxu0 0.0
  %311 = vmatprep.subr.mxu0 0.0
  %312 = vmatpush1.msra.mxu0 0.0
  %313 = vmatprep.subr.mxu0 0.0
  %314 = vmatpush1.msra.mxu0 0.0
  %315 = vmatprep.subr.mxu0 0.0
  %316 = vmatpush1.msra.mxu0 0.0
  %317 = vmatprep.subr.mxu0 0.0
  %318 = vmatpush1.msra.mxu0 0.0
  %319 = vmatprep.subr.mxu0 0.0
  %320 = vmatpush1.msra.mxu0 0.0
  %321 = vmatprep.subr.mxu0 0.0
  %322 = vmatpush1.msra.mxu0 0.0
  %323 = vmatprep.subr.mxu0 0.0
  %324 = vmatpush1.msra.mxu0 0.0
  %325 = vmatprep.subr.mxu0 0.0
  %326 = vmatpush1.msra.mxu0 0.0
  %327 = vmatprep.subr.mxu0 0.0
  %328 = vmatpush1.msra.mxu0 0.0
  %329 = vmatprep.subr.mxu0 0.0
  %330 = vmatpush1.msra.mxu0 0.0
  %331 = vmatprep.subr.mxu0 0.0
  %332 = vmatpush1.msra.mxu0 0.0
  %333 = vmatprep.subr.mxu0 0.0
  %334 = vmatpush1.msra.mxu0 0.0
  %335 = vmatprep.subr.mxu0 0.0
  %336 = vmatpush1.msra.mxu0 0.0
  %337 = vmatprep.subr.mxu0 0.0
  %338 = vmatpush1.msra.mxu0 0.0
  %339 = vmatprep.subr.mxu0 0.0
  %340 = vmatpush1.msra.mxu0 0.0
  %341 = vmatprep.subr.mxu0 0.0
  %342 = vmatpush1.msra.mxu0 0.0
  %343 = vmatprep.subr.mxu0 0.0
  %344 = vmatpush1.msra.mxu0 0.0
  %345 = vmatprep.subr.mxu0 0.0
  %346 = vmatpush1.msra.mxu0 0.0
  %347 = vmatprep.subr.mxu0 0.0
  %348 = vmatpush1.msra.mxu0 0.0
  %349 = vmatprep.subr.mxu0 0.0
  %350 = vmatpush1.msra.mxu0 0.0
  %351 = vmatprep.subr.mxu0 0.0
  %352 = vmatpush1.msra.mxu0 0.0
  %353 = vmatprep.subr.mxu0 0.0
  %354 = vmatpush1.msra.mxu0 0.0
  %355 = vmatprep.subr.mxu0 0.0
  %356 = vmatpush1.msra.mxu0 0.0
  %357 = vmatprep.subr.mxu0 0.0
  %358 = vmatpush1.msra.mxu0 0.0
  %359 = vmatprep.subr.mxu0 0.0
  %360 = vmatpush1.msra.mxu0 0.0
  %361 = vmatprep.subr.mxu0 0.0
  %362 = vmatpush1.msra.mxu0 0.0
  %363 = vmatprep.mubr.f32.mxu0 0.0
  %364 = vmatmul.mubr.f32.gmra.mrb[0].mxu0 %v297
  %v365 = vpop.f32.mrb[0].mxu0
  %v366 = vadd.f32 %v50, %v365
  %v367 = vpop.f32.mrb[0].mxu0
  %368 = vdwg.mxu0
  %v369 = vmul.f32 %v294, 0.5
  %v370 = vmul.f32 %v366, 0.5
  %v371 = vadd.f32 %v369, %v370
  %v372 = vtanh.pop %v371
  %v374 = vsel %vm52, %v372, 0
  %376 = vmatprep.subr.mxu0 0.0
  %377 = vmatpush1.msra.mxu0 %v37
  %378 = vmatprep.subr.mxu0 0.0
  %379 = vmatpush1.msra.mxu0 %v38
  %380 = vmatprep.subr.mxu0 0.0
  %381 = vmatpush1.msra.mxu0 %v39
  %382 = vmatprep.subr.mxu0 0.0
  %383 = vmatpush1.msra.mxu0 %v40
  %384 = vmatprep.subr.mxu0 0.0
  %385 = vmatpush1.msra.mxu0 0.0
  %386 = vmatprep.subr.mxu0 0.0
  %387 = vmatpush1.msra.mxu0 0.0
  %388 = vmatprep.subr.mxu0 0.0
  %389 = vmatpush1.msra.mxu0 0.0
  %390 = vmatprep.subr.mxu0 0.0
  %391 = vmatpush1.msra.mxu0 0.0
  %392 = vmatprep.subr.mxu0 0.0
  %393 = vmatpush1.msra.mxu0 0.0
  %394 = vmatprep.subr.mxu0 0.0
  %395 = vmatpush1.msra.mxu0 0.0
  %396 = vmatprep.subr.mxu0 0.0
  %397 = vmatpush1.msra.mxu0 0.0
  %398 = vmatprep.subr.mxu0 0.0
  %399 = vmatpush1.msra.mxu0 0.0
  %400 = vmatprep.subr.mxu0 0.0
  %401 = vmatpush1.msra.mxu0 0.0
  %402 = vmatprep.subr.mxu0 0.0
  %403 = vmatpush1.msra.mxu0 0.0
  %404 = vmatprep.subr.mxu0 0.0
  %405 = vmatpush1.msra.mxu0 0.0
  %406 = vmatprep.subr.mxu0 0.0
  %407 = vmatpush1.msra.mxu0 0.0
  %408 = vmatprep.subr.mxu0 0.0
  %409 = vmatpush1.msra.mxu0 0.0
  %410 = vmatprep.subr.mxu0 0.0
  %411 = vmatpush1.msra.mxu0 0.0
  %412 = vmatprep.subr.mxu0 0.0
  %413 = vmatpush1.msra.mxu0 0.0
  %414 = vmatprep.subr.mxu0 0.0
  %415 = vmatpush1.msra.mxu0 0.0
  %416 = vmatprep.subr.mxu0 0.0
  %417 = vmatpush1.msra.mxu0 0.0
  %418 = vmatprep.subr.mxu0 0.0
  %419 = vmatpush1.msra.mxu0 0.0
  %420 = vmatprep.subr.mxu0 0.0
  %421 = vmatpush1.msra.mxu0 0.0
  %422 = vmatprep.subr.mxu0 0.0
  %423 = vmatpush1.msra.mxu0 0.0
  %424 = vmatprep.subr.mxu0 0.0
  %425 = vmatpush1.msra.mxu0 0.0
  %426 = vmatprep.subr.mxu0 0.0
  %427 = vmatpush1.msra.mxu0 0.0
  %428 = vmatprep.subr.mxu0 0.0
  %429 = vmatpush1.msra.mxu0 0.0
  %430 = vmatprep.subr.mxu0 0.0
  %431 = vmatpush1.msra.mxu0 0.0
  %432 = vmatprep.subr.mxu0 0.0
  %433 = vmatpush1.msra.mxu0 0.0
  %434 = vmatprep.subr.mxu0 0.0
  %435 = vmatpush1.msra.mxu0 0.0
  %436 = vmatprep.subr.mxu0 0.0
  %437 = vmatpush1.msra.mxu0 0.0
  %438 = vmatprep.subr.mxu0 0.0
  %439 = vmatpush1.msra.mxu0 0.0
  %440 = vmatprep.mubr.f32.mxu0 0.0
  %441 = vmatmul.mubr.f32.gmra.mrb[0].mxu0 %v374
  %v442 = vpop.f32.mrb[0].mxu0
  %v443 = vadd.f32 %v134, %v442
  %v444 = vpop.f32.mrb[0].mxu0
  %445 = vdwg.mxu0
  %s446 = scalar_lea.vmem %s0, 8
  %v447 = vld [vmem:[%s446] sm:$0xff]
  %v448 = vsub.f32 %v443, %v447
  %s449 = scalar_lea.vmem %s7, 8
  %450 = vst.msk [vmem:[%s449] sm:$0xff] %vm211, %v448
  %v452 = vsel %vm211, %v448, 0
  %454 = vmatprep.subr.mxu0 0.0
  %455 = vmatpush1.msra.mxu0 %v218
  %456 = vmatprep.subr.mxu0 0.0
  %457 = vmatpush1.msra.mxu0 0.0
  %458 = vmatprep.subr.mxu0 0.0
  %459 = vmatpush1.msra.mxu0 0.0
  %460 = vmatprep.subr.mxu0 0.0
  %461 = vmatpush1.msra.mxu0 0.0
  %462 = vmatprep.subr.mxu0 0.0
  %463 = vmatpush1.msra.mxu0 0.0
  %464 = vmatprep.subr.mxu0 0.0
  %465 = vmatpush1.msra.mxu0 0.0
  %466 = vmatprep.subr.mxu0 0.0
  %467 = vmatpush1.msra.mxu0 0.0
  %468 = vmatprep.subr.mxu0 0.0
  %469 = vmatpush1.msra.mxu0 0.0
  %470 = vmatprep.subr.mxu0 0.0
  %471 = vmatpush1.msra.mxu0 0.0
  %472 = vmatprep.subr.mxu0 0.0
  %473 = vmatpush1.msra.mxu0 0.0
  %474 = vmatprep.subr.mxu0 0.0
  %475 = vmatpush1.msra.mxu0 0.0
  %476 = vmatprep.subr.mxu0 0.0
  %477 = vmatpush1.msra.mxu0 0.0
  %478 = vmatprep.subr.mxu0 0.0
  %479 = vmatpush1.msra.mxu0 0.0
  %480 = vmatprep.subr.mxu0 0.0
  %481 = vmatpush1.msra.mxu0 0.0
  %482 = vmatprep.subr.mxu0 0.0
  %483 = vmatpush1.msra.mxu0 0.0
  %484 = vmatprep.subr.mxu0 0.0
  %485 = vmatpush1.msra.mxu0 0.0
  %486 = vmatprep.subr.mxu0 0.0
  %487 = vmatpush1.msra.mxu0 0.0
  %488 = vmatprep.subr.mxu0 0.0
  %489 = vmatpush1.msra.mxu0 0.0
  %490 = vmatprep.subr.mxu0 0.0
  %491 = vmatpush1.msra.mxu0 0.0
  %492 = vmatprep.subr.mxu0 0.0
  %493 = vmatpush1.msra.mxu0 0.0
  %494 = vmatprep.subr.mxu0 0.0
  %495 = vmatpush1.msra.mxu0 0.0
  %496 = vmatprep.subr.mxu0 0.0
  %497 = vmatpush1.msra.mxu0 0.0
  %498 = vmatprep.subr.mxu0 0.0
  %499 = vmatpush1.msra.mxu0 0.0
  %500 = vmatprep.subr.mxu0 0.0
  %501 = vmatpush1.msra.mxu0 0.0
  %502 = vmatprep.subr.mxu0 0.0
  %503 = vmatpush1.msra.mxu0 0.0
  %504 = vmatprep.subr.mxu0 0.0
  %505 = vmatpush1.msra.mxu0 0.0
  %506 = vmatprep.subr.mxu0 0.0
  %507 = vmatpush1.msra.mxu0 0.0
  %508 = vmatprep.subr.mxu0 0.0
  %509 = vmatpush1.msra.mxu0 0.0
  %510 = vmatprep.subr.mxu0 0.0
  %511 = vmatpush1.msra.mxu0 0.0
  %512 = vmatprep.subr.mxu0 0.0
  %513 = vmatpush1.msra.mxu0 0.0
  %514 = vmatprep.subr.mxu0 0.0
  %515 = vmatpush1.msra.mxu0 0.0
  %516 = vmatprep.subr.mxu0 0.0
  %517 = vmatpush1.msra.mxu0 0.0
  %518 = vmatprep.mubr.f32.mxu0 0.0
  %519 = vmatmul.mubr.f32.gmra.mrb[0].mxu0 %v452
  %v520 = vpop.f32.mrb[0].mxu0
  %v521 = vadd.f32 0.0, %v520
  %v522 = vpop.f32.mrb[0].mxu0
  %523 = vdwg.mxu0
  %v524 = vmul.f32 %v372, %v372
  %v525 = vsub.f32 1.0, %v524
  %v526 = vmul.f32 %v525, 0.1
  %v527 = vmul.f32 %v526, %v521
  %v528 = vsub.f32 %v371, %v527
  %v529 = vtanh.pop %v528
  %v531 = vsel %vm52, %v529, 0
  %533 = vmatprep.subr.mxu0 0.0
  %534 = vmatpush1.msra.mxu0 %v33
  %535 = vmatprep.subr.mxu0 0.0
  %536 = vmatpush1.msra.mxu0 %v34
  %537 = vmatprep.subr.mxu0 0.0
  %538 = vmatpush1.msra.mxu0 %v35
  %539 = vmatprep.subr.mxu0 0.0
  %540 = vmatpush1.msra.mxu0 %v36
  %541 = vmatprep.subr.mxu0 0.0
  %542 = vmatpush1.msra.mxu0 0.0
  %543 = vmatprep.subr.mxu0 0.0
  %544 = vmatpush1.msra.mxu0 0.0
  %545 = vmatprep.subr.mxu0 0.0
  %546 = vmatpush1.msra.mxu0 0.0
  %547 = vmatprep.subr.mxu0 0.0
  %548 = vmatpush1.msra.mxu0 0.0
  %549 = vmatprep.subr.mxu0 0.0
  %550 = vmatpush1.msra.mxu0 0.0
  %551 = vmatprep.subr.mxu0 0.0
  %552 = vmatpush1.msra.mxu0 0.0
  %553 = vmatprep.subr.mxu0 0.0
  %554 = vmatpush1.msra.mxu0 0.0
  %555 = vmatprep.subr.mxu0 0.0
  %556 = vmatpush1.msra.mxu0 0.0
  %557 = vmatprep.subr.mxu0 0.0
  %558 = vmatpush1.msra.mxu0 0.0
  %559 = vmatprep.subr.mxu0 0.0
  %560 = vmatpush1.msra.mxu0 0.0
  %561 = vmatprep.subr.mxu0 0.0
  %562 = vmatpush1.msra.mxu0 0.0
  %563 = vmatprep.subr.mxu0 0.0
  %564 = vmatpush1.msra.mxu0 0.0
  %565 = vmatprep.subr.mxu0 0.0
  %566 = vmatpush1.msra.mxu0 0.0
  %567 = vmatprep.subr.mxu0 0.0
  %568 = vmatpush1.msra.mxu0 0.0
  %569 = vmatprep.subr.mxu0 0.0
  %570 = vmatpush1.msra.mxu0 0.0
  %571 = vmatprep.subr.mxu0 0.0
  %572 = vmatpush1.msra.mxu0 0.0
  %573 = vmatprep.subr.mxu0 0.0
  %574 = vmatpush1.msra.mxu0 0.0
  %575 = vmatprep.subr.mxu0 0.0
  %576 = vmatpush1.msra.mxu0 0.0
  %577 = vmatprep.subr.mxu0 0.0
  %578 = vmatpush1.msra.mxu0 0.0
  %579 = vmatprep.subr.mxu0 0.0
  %580 = vmatpush1.msra.mxu0 0.0
  %581 = vmatprep.subr.mxu0 0.0
  %582 = vmatpush1.msra.mxu0 0.0
  %583 = vmatprep.subr.mxu0 0.0
  %584 = vmatpush1.msra.mxu0 0.0
  %585 = vmatprep.subr.mxu0 0.0
  %586 = vmatpush1.msra.mxu0 0.0
  %587 = vmatprep.subr.mxu0 0.0
  %588 = vmatpush1.msra.mxu0 0.0
  %589 = vmatprep.subr.mxu0 0.0
  %590 = vmatpush1.msra.mxu0 0.0
  %591 = vmatprep.subr.mxu0 0.0
  %592 = vmatpush1.msra.mxu0 0.0
  %593 = vmatprep.subr.mxu0 0.0
  %594 = vmatpush1.msra.mxu0 0.0
  %595 = vmatprep.subr.mxu0 0.0
  %596 = vmatpush1.msra.mxu0 0.0
  %597 = vmatprep.mubr.f32.mxu0 0.0
  %598 = vmatmul.mubr.f32.gmra.mrb[0].mxu0 %v531
  %v599 = vpop.f32.mrb[0].mxu0
  %v600 = vadd.f32 %v50, %v599
  %v601 = vpop.f32.mrb[0].mxu0
  %602 = vdwg.mxu0
  %v603 = vmul.f32 %v528, 0.5
  %v604 = vmul.f32 %v600, 0.5
  %v605 = vadd.f32 %v603, %v604
  %v606 = vtanh.pop %v605
  %v608 = vsel %vm52, %v606, 0
  %610 = vmatprep.subr.mxu0 0.0
  %611 = vmatpush1.msra.mxu0 %v37
  %612 = vmatprep.subr.mxu0 0.0
  %613 = vmatpush1.msra.mxu0 %v38
  %614 = vmatprep.subr.mxu0 0.0
  %615 = vmatpush1.msra.mxu0 %v39
  %616 = vmatprep.subr.mxu0 0.0
  %617 = vmatpush1.msra.mxu0 %v40
  %618 = vmatprep.subr.mxu0 0.0
  %619 = vmatpush1.msra.mxu0 0.0
  %620 = vmatprep.subr.mxu0 0.0
  %621 = vmatpush1.msra.mxu0 0.0
  %622 = vmatprep.subr.mxu0 0.0
  %623 = vmatpush1.msra.mxu0 0.0
  %624 = vmatprep.subr.mxu0 0.0
  %625 = vmatpush1.msra.mxu0 0.0
  %626 = vmatprep.subr.mxu0 0.0
  %627 = vmatpush1.msra.mxu0 0.0
  %628 = vmatprep.subr.mxu0 0.0
  %629 = vmatpush1.msra.mxu0 0.0
  %630 = vmatprep.subr.mxu0 0.0
  %631 = vmatpush1.msra.mxu0 0.0
  %632 = vmatprep.subr.mxu0 0.0
  %633 = vmatpush1.msra.mxu0 0.0
  %634 = vmatprep.subr.mxu0 0.0
  %635 = vmatpush1.msra.mxu0 0.0
  %636 = vmatprep.subr.mxu0 0.0
  %637 = vmatpush1.msra.mxu0 0.0
  %638 = vmatprep.subr.mxu0 0.0
  %639 = vmatpush1.msra.mxu0 0.0
  %640 = vmatprep.subr.mxu0 0.0
  %641 = vmatpush1.msra.mxu0 0.0
  %642 = vmatprep.subr.mxu0 0.0
  %643 = vmatpush1.msra.mxu0 0.0
  %644 = vmatprep.subr.mxu0 0.0
  %645 = vmatpush1.msra.mxu0 0.0
  %646 = vmatprep.subr.mxu0 0.0
  %647 = vmatpush1.msra.mxu0 0.0
  %648 = vmatprep.subr.mxu0 0.0
  %649 = vmatpush1.msra.mxu0 0.0
  %650 = vmatprep.subr.mxu0 0.0
  %651 = vmatpush1.msra.mxu0 0.0
  %652 = vmatprep.subr.mxu0 0.0
  %653 = vmatpush1.msra.mxu0 0.0
  %654 = vmatprep.subr.mxu0 0.0
  %655 = vmatpush1.msra.mxu0 0.0
  %656 = vmatprep.subr.mxu0 0.0
  %657 = vmatpush1.msra.mxu0 0.0
  %658 = vmatprep.subr.mxu0 0.0
  %659 = vmatpush1.msra.mxu0 0.0
  %660 = vmatprep.subr.mxu0 0.0
  %661 = vmatpush1.msra.mxu0 0.0
  %662 = vmatprep.subr.mxu0 0.0
  %663 = vmatpush1.msra.mxu0 0.0
  %664 = vmatprep.subr.mxu0 0.0
  %665 = vmatpush1.msra.mxu0 0.0
  %666 = vmatprep.subr.mxu0 0.0
  %667 = vmatpush1.msra.mxu0 0.0
  %668 = vmatprep.subr.mxu0 0.0
  %669 = vmatpush1.msra.mxu0 0.0
  %670 = vmatprep.subr.mxu0 0.0
  %671 = vmatpush1.msra.mxu0 0.0
  %672 = vmatprep.subr.mxu0 0.0
  %673 = vmatpush1.msra.mxu0 0.0
  %674 = vmatprep.mubr.f32.mxu0 0.0
  %675 = vmatmul.mubr.f32.gmra.mrb[0].mxu0 %v608
  %v676 = vpop.f32.mrb[0].mxu0
  %v677 = vadd.f32 %v134, %v676
  %v678 = vpop.f32.mrb[0].mxu0
  %679 = vdwg.mxu0
  %s680 = scalar_lea.vmem %s0, 16
  %v681 = vld [vmem:[%s680] sm:$0xff]
  %v682 = vsub.f32 %v677, %v681
  %s683 = scalar_lea.vmem %s7, 16
  %684 = vst.msk [vmem:[%s683] sm:$0xff] %vm211, %v682
  %v686 = vsel %vm211, %v682, 0
  %688 = vmatprep.subr.mxu0 0.0
  %689 = vmatpush1.msra.mxu0 %v218
  %690 = vmatprep.subr.mxu0 0.0
  %691 = vmatpush1.msra.mxu0 0.0
  %692 = vmatprep.subr.mxu0 0.0
  %693 = vmatpush1.msra.mxu0 0.0
  %694 = vmatprep.subr.mxu0 0.0
  %695 = vmatpush1.msra.mxu0 0.0
  %696 = vmatprep.subr.mxu0 0.0
  %697 = vmatpush1.msra.mxu0 0.0
  %698 = vmatprep.subr.mxu0 0.0
  %699 = vmatpush1.msra.mxu0 0.0
  %700 = vmatprep.subr.mxu0 0.0
  %701 = vmatpush1.msra.mxu0 0.0
  %702 = vmatprep.subr.mxu0 0.0
  %703 = vmatpush1.msra.mxu0 0.0
  %704 = vmatprep.subr.mxu0 0.0
  %705 = vmatpush1.msra.mxu0 0.0
  %706 = vmatprep.subr.mxu0 0.0
  %707 = vmatpush1.msra.mxu0 0.0
  %708 = vmatprep.subr.mxu0 0.0
  %709 = vmatpush1.msra.mxu0 0.0
  %710 = vmatprep.subr.mxu0 0.0
  %711 = vmatpush1.msra.mxu0 0.0
  %712 = vmatprep.subr.mxu0 0.0
  %713 = vmatpush1.msra.mxu0 0.0
  %714 = vmatprep.subr.mxu0 0.0
  %715 = vmatpush1.msra.mxu0 0.0
  %716 = vmatprep.subr.mxu0 0.0
  %717 = vmatpush1.msra.mxu0 0.0
  %718 = vmatprep.subr.mxu0 0.0
  %719 = vmatpush1.msra.mxu0 0.0
  %720 = vmatprep.subr.mxu0 0.0
  %721 = vmatpush1.msra.mxu0 0.0
  %722 = vmatprep.subr.mxu0 0.0
  %723 = vmatpush1.msra.mxu0 0.0
  %724 = vmatprep.subr.mxu0 0.0
  %725 = vmatpush1.msra.mxu0 0.0
  %726 = vmatprep.subr.mxu0 0.0
  %727 = vmatpush1.msra.mxu0 0.0
  %728 = vmatprep.subr.mxu0 0.0
  %729 = vmatpush1.msra.mxu0 0.0
  %730 = vmatprep.subr.mxu0 0.0
  %731 = vmatpush1.msra.mxu0 0.0
  %732 = vmatprep.subr.mxu0 0.0
  %733 = vmatpush1.msra.mxu0 0.0
  %734 = vmatprep.subr.mxu0 0.0
  %735 = vmatpush1.msra.mxu0 0.0
  %736 = vmatprep.subr.mxu0 0.0
  %737 = vmatpush1.msra.mxu0 0.0
  %738 = vmatprep.subr.mxu0 0.0
  %739 = vmatpush1.msra.mxu0 0.0
  %740 = vmatprep.subr.mxu0 0.0
  %741 = vmatpush1.msra.mxu0 0.0
  %742 = vmatprep.subr.mxu0 0.0
  %743 = vmatpush1.msra.mxu0 0.0
  %744 = vmatprep.subr.mxu0 0.0
  %745 = vmatpush1.msra.mxu0 0.0
  %746 = vmatprep.subr.mxu0 0.0
  %747 = vmatpush1.msra.mxu0 0.0
  %748 = vmatprep.subr.mxu0 0.0
  %749 = vmatpush1.msra.mxu0 0.0
  %750 = vmatprep.subr.mxu0 0.0
  %751 = vmatpush1.msra.mxu0 0.0
  %752 = vmatprep.mubr.f32.mxu0 0.0
  %753 = vmatmul.mubr.f32.gmra.mrb[0].mxu0 %v686
  %v754 = vpop.f32.mrb[0].mxu0
  %v755 = vadd.f32 0.0, %v754
  %v756 = vpop.f32.mrb[0].mxu0
  %757 = vdwg.mxu0
  %v758 = vmul.f32 %v606, %v606
  %v759 = vsub.f32 1.0, %v758
  %v760 = vmul.f32 %v759, 0.1
  %v761 = vmul.f32 %v760, %v755
  %v762 = vsub.f32 %v605, %v761
  %v763 = vtanh.pop %v762
  %v765 = vsel %vm52, %v763, 0
  %767 = vmatprep.subr.mxu0 0.0
  %768 = vmatpush1.msra.mxu0 %v33
  %769 = vmatprep.subr.mxu0 0.0
  %770 = vmatpush1.msra.mxu0 %v34
  %771 = vmatprep.subr.mxu0 0.0
  %772 = vmatpush1.msra.mxu0 %v35
  %773 = vmatprep.subr.mxu0 0.0
  %774 = vmatpush1.msra.mxu0 %v36
  %775 = vmatprep.subr.mxu0 0.0
  %776 = vmatpush1.msra.mxu0 0.0
  %777 = vmatprep.subr.mxu0 0.0
  %778 = vmatpush1.msra.mxu0 0.0
  %779 = vmatprep.subr.mxu0 0.0
  %780 = vmatpush1.msra.mxu0 0.0
  %781 = vmatprep.subr.mxu0 0.0
  %782 = vmatpush1.msra.mxu0 0.0
  %783 = vmatprep.subr.mxu0 0.0
  %784 = vmatpush1.msra.mxu0 0.0
  %785 = vmatprep.subr.mxu0 0.0
  %786 = vmatpush1.msra.mxu0 0.0
  %787 = vmatprep.subr.mxu0 0.0
  %788 = vmatpush1.msra.mxu0 0.0
  %789 = vmatprep.subr.mxu0 0.0
  %790 = vmatpush1.msra.mxu0 0.0
  %791 = vmatprep.subr.mxu0 0.0
  %792 = vmatpush1.msra.mxu0 0.0
  %793 = vmatprep.subr.mxu0 0.0
  %794 = vmatpush1.msra.mxu0 0.0
  %795 = vmatprep.subr.mxu0 0.0
  %796 = vmatpush1.msra.mxu0 0.0
  %797 = vmatprep.subr.mxu0 0.0
  %798 = vmatpush1.msra.mxu0 0.0
  %799 = vmatprep.subr.mxu0 0.0
  %800 = vmatpush1.msra.mxu0 0.0
  %801 = vmatprep.subr.mxu0 0.0
  %802 = vmatpush1.msra.mxu0 0.0
  %803 = vmatprep.subr.mxu0 0.0
  %804 = vmatpush1.msra.mxu0 0.0
  %805 = vmatprep.subr.mxu0 0.0
  %806 = vmatpush1.msra.mxu0 0.0
  %807 = vmatprep.subr.mxu0 0.0
  %808 = vmatpush1.msra.mxu0 0.0
  %809 = vmatprep.subr.mxu0 0.0
  %810 = vmatpush1.msra.mxu0 0.0
  %811 = vmatprep.subr.mxu0 0.0
  %812 = vmatpush1.msra.mxu0 0.0
  %813 = vmatprep.subr.mxu0 0.0
  %814 = vmatpush1.msra.mxu0 0.0
  %815 = vmatprep.subr.mxu0 0.0
  %816 = vmatpush1.msra.mxu0 0.0
  %817 = vmatprep.subr.mxu0 0.0
  %818 = vmatpush1.msra.mxu0 0.0
  %819 = vmatprep.subr.mxu0 0.0
  %820 = vmatpush1.msra.mxu0 0.0
  %821 = vmatprep.subr.mxu0 0.0
  %822 = vmatpush1.msra.mxu0 0.0
  %823 = vmatprep.subr.mxu0 0.0
  %824 = vmatpush1.msra.mxu0 0.0
  %825 = vmatprep.subr.mxu0 0.0
  %826 = vmatpush1.msra.mxu0 0.0
  %827 = vmatprep.subr.mxu0 0.0
  %828 = vmatpush1.msra.mxu0 0.0
  %829 = vmatprep.subr.mxu0 0.0
  %830 = vmatpush1.msra.mxu0 0.0
  %831 = vmatprep.mubr.f32.mxu0 0.0
  %832 = vmatmul.mubr.f32.gmra.mrb[0].mxu0 %v765
  %v833 = vpop.f32.mrb[0].mxu0
  %v834 = vadd.f32 %v50, %v833
  %v835 = vpop.f32.mrb[0].mxu0
  %836 = vdwg.mxu0
  %v837 = vmul.f32 %v762, 0.5
  %v838 = vmul.f32 %v834, 0.5
  %v839 = vadd.f32 %v837, %v838
  %v840 = vtanh.pop %v839
  %v842 = vsel %vm52, %v840, 0
  %844 = vmatprep.subr.mxu0 0.0
  %845 = vmatpush1.msra.mxu0 %v37
  %846 = vmatprep.subr.mxu0 0.0
  %847 = vmatpush1.msra.mxu0 %v38
  %848 = vmatprep.subr.mxu0 0.0
  %849 = vmatpush1.msra.mxu0 %v39
  %850 = vmatprep.subr.mxu0 0.0
  %851 = vmatpush1.msra.mxu0 %v40
  %852 = vmatprep.subr.mxu0 0.0
  %853 = vmatpush1.msra.mxu0 0.0
  %854 = vmatprep.subr.mxu0 0.0
  %855 = vmatpush1.msra.mxu0 0.0
  %856 = vmatprep.subr.mxu0 0.0
  %857 = vmatpush1.msra.mxu0 0.0
  %858 = vmatprep.subr.mxu0 0.0
  %859 = vmatpush1.msra.mxu0 0.0
  %860 = vmatprep.subr.mxu0 0.0
  %861 = vmatpush1.msra.mxu0 0.0
  %862 = vmatprep.subr.mxu0 0.0
  %863 = vmatpush1.msra.mxu0 0.0
  %864 = vmatprep.subr.mxu0 0.0
  %865 = vmatpush1.msra.mxu0 0.0
  %866 = vmatprep.subr.mxu0 0.0
  %867 = vmatpush1.msra.mxu0 0.0
  %868 = vmatprep.subr.mxu0 0.0
  %869 = vmatpush1.msra.mxu0 0.0
  %870 = vmatprep.subr.mxu0 0.0
  %871 = vmatpush1.msra.mxu0 0.0
  %872 = vmatprep.subr.mxu0 0.0
  %873 = vmatpush1.msra.mxu0 0.0
  %874 = vmatprep.subr.mxu0 0.0
  %875 = vmatpush1.msra.mxu0 0.0
  %876 = vmatprep.subr.mxu0 0.0
  %877 = vmatpush1.msra.mxu0 0.0
  %878 = vmatprep.subr.mxu0 0.0
  %879 = vmatpush1.msra.mxu0 0.0
  %880 = vmatprep.subr.mxu0 0.0
  %881 = vmatpush1.msra.mxu0 0.0
  %882 = vmatprep.subr.mxu0 0.0
  %883 = vmatpush1.msra.mxu0 0.0
  %884 = vmatprep.subr.mxu0 0.0
  %885 = vmatpush1.msra.mxu0 0.0
  %886 = vmatprep.subr.mxu0 0.0
  %887 = vmatpush1.msra.mxu0 0.0
  %888 = vmatprep.subr.mxu0 0.0
  %889 = vmatpush1.msra.mxu0 0.0
  %890 = vmatprep.subr.mxu0 0.0
  %891 = vmatpush1.msra.mxu0 0.0
  %892 = vmatprep.subr.mxu0 0.0
  %893 = vmatpush1.msra.mxu0 0.0
  %894 = vmatprep.subr.mxu0 0.0
  %895 = vmatpush1.msra.mxu0 0.0
  %896 = vmatprep.subr.mxu0 0.0
  %897 = vmatpush1.msra.mxu0 0.0
  %898 = vmatprep.subr.mxu0 0.0
  %899 = vmatpush1.msra.mxu0 0.0
  %900 = vmatprep.subr.mxu0 0.0
  %901 = vmatpush1.msra.mxu0 0.0
  %902 = vmatprep.subr.mxu0 0.0
  %903 = vmatpush1.msra.mxu0 0.0
  %904 = vmatprep.subr.mxu0 0.0
  %905 = vmatpush1.msra.mxu0 0.0
  %906 = vmatprep.subr.mxu0 0.0
  %907 = vmatpush1.msra.mxu0 0.0
  %908 = vmatprep.mubr.f32.mxu0 0.0
  %909 = vmatmul.mubr.f32.gmra.mrb[0].mxu0 %v842
  %v910 = vpop.f32.mrb[0].mxu0
  %v911 = vadd.f32 %v134, %v910
  %v912 = vpop.f32.mrb[0].mxu0
  %913 = vdwg.mxu0
  %s914 = scalar_lea.vmem %s0, 24
  %v915 = vld [vmem:[%s914] sm:$0xff]
  %v916 = vsub.f32 %v911, %v915
  %s917 = scalar_lea.vmem %s7, 24
  %918 = vst.msk [vmem:[%s917] sm:$0xff] %vm211, %v916
  %v920 = vsel %vm211, %v916, 0
  %922 = vmatprep.subr.mxu0 0.0
  %923 = vmatpush1.msra.mxu0 %v218
  %924 = vmatprep.subr.mxu0 0.0
  %925 = vmatpush1.msra.mxu0 0.0
  %926 = vmatprep.subr.mxu0 0.0
  %927 = vmatpush1.msra.mxu0 0.0
  %928 = vmatprep.subr.mxu0 0.0
  %929 = vmatpush1.msra.mxu0 0.0
  %930 = vmatprep.subr.mxu0 0.0
  %931 = vmatpush1.msra.mxu0 0.0
  %932 = vmatprep.subr.mxu0 0.0
  %933 = vmatpush1.msra.mxu0 0.0
  %934 = vmatprep.subr.mxu0 0.0
  %935 = vmatpush1.msra.mxu0 0.0
  %936 = vmatprep.subr.mxu0 0.0
  %937 = vmatpush1.msra.mxu0 0.0
  %938 = vmatprep.subr.mxu0 0.0
  %939 = vmatpush1.msra.mxu0 0.0
  %940 = vmatprep.subr.mxu0 0.0
  %941 = vmatpush1.msra.mxu0 0.0
  %942 = vmatprep.subr.mxu0 0.0
  %943 = vmatpush1.msra.mxu0 0.0
  %944 = vmatprep.subr.mxu0 0.0
  %945 = vmatpush1.msra.mxu0 0.0
  %946 = vmatprep.subr.mxu0 0.0
  %947 = vmatpush1.msra.mxu0 0.0
  %948 = vmatprep.subr.mxu0 0.0
  %949 = vmatpush1.msra.mxu0 0.0
  %950 = vmatprep.subr.mxu0 0.0
  %951 = vmatpush1.msra.mxu0 0.0
  %952 = vmatprep.subr.mxu0 0.0
  %953 = vmatpush1.msra.mxu0 0.0
  %954 = vmatprep.subr.mxu0 0.0
  %955 = vmatpush1.msra.mxu0 0.0
  %956 = vmatprep.subr.mxu0 0.0
  %957 = vmatpush1.msra.mxu0 0.0
  %958 = vmatprep.subr.mxu0 0.0
  %959 = vmatpush1.msra.mxu0 0.0
  %960 = vmatprep.subr.mxu0 0.0
  %961 = vmatpush1.msra.mxu0 0.0
  %962 = vmatprep.subr.mxu0 0.0
  %963 = vmatpush1.msra.mxu0 0.0
  %964 = vmatprep.subr.mxu0 0.0
  %965 = vmatpush1.msra.mxu0 0.0
  %966 = vmatprep.subr.mxu0 0.0
  %967 = vmatpush1.msra.mxu0 0.0
  %968 = vmatprep.subr.mxu0 0.0
  %969 = vmatpush1.msra.mxu0 0.0
  %970 = vmatprep.subr.mxu0 0.0
  %971 = vmatpush1.msra.mxu0 0.0
  %972 = vmatprep.subr.mxu0 0.0
  %973 = vmatpush1.msra.mxu0 0.0
  %974 = vmatprep.subr.mxu0 0.0
  %975 = vmatpush1.msra.mxu0 0.0
  %976 = vmatprep.subr.mxu0 0.0
  %977 = vmatpush1.msra.mxu0 0.0
  %978 = vmatprep.subr.mxu0 0.0
  %979 = vmatpush1.msra.mxu0 0.0
  %980 = vmatprep.subr.mxu0 0.0
  %981 = vmatpush1.msra.mxu0 0.0
  %982 = vmatprep.subr.mxu0 0.0
  %983 = vmatpush1.msra.mxu0 0.0
  %984 = vmatprep.subr.mxu0 0.0
  %985 = vmatpush1.msra.mxu0 0.0
  %986 = vmatprep.mubr.f32.mxu0 0.0
  %987 = vmatmul.mubr.f32.gmra.mrb[0].mxu0 %v920
  %v988 = vpop.f32.mrb[0].mxu0
  %v989 = vadd.f32 0.0, %v988
  %v990 = vpop.f32.mrb[0].mxu0
  %991 = vdwg.mxu0
  %v992 = vmul.f32 %v840, %v840
  %v993 = vsub.f32 1.0, %v992
  %v994 = vmul.f32 %v993, 0.1
  %v995 = vmul.f32 %v994, %v989
  %v996 = vsub.f32 %v839, %v995
  %v997 = vtanh.pop %v996
  %v999 = vsel %vm52, %v997, 0
  %1001 = vmatprep.subr.mxu0 0.0
  %1002 = vmatpush1.msra.mxu0 %v33
  %1003 = vmatprep.subr.mxu0 0.0
  %1004 = vmatpush1.msra.mxu0 %v34
  %1005 = vmatprep.subr.mxu0 0.0
  %1006 = vmatpush1.msra.mxu0 %v35
  %1007 = vmatprep.subr.mxu0 0.0
  %1008 = vmatpush1.msra.mxu0 %v36
  %1009 = vmatprep.subr.mxu0 0.0
  %1010 = vmatpush1.msra.mxu0 0.0
  %1011 = vmatprep.subr.mxu0 0.0
  %1012 = vmatpush1.msra.mxu0 0.0
  %1013 = vmatprep.subr.mxu0 0.0
  %1014 = vmatpush1.msra.mxu0 0.0
  %1015 = vmatprep.subr.mxu0 0.0
  %1016 = vmatpush1.msra.mxu0 0.0
  %1017 = vmatprep.subr.mxu0 0.0
  %1018 = vmatpush1.msra.mxu0 0.0
  %1019 = vmatprep.subr.mxu0 0.0
  %1020 = vmatpush1.msra.mxu0 0.0
  %1021 = vmatprep.subr.mxu0 0.0
  %1022 = vmatpush1.msra.mxu0 0.0
  %1023 = vmatprep.subr.mxu0 0.0
  %1024 = vmatpush1.msra.mxu0 0.0
  %1025 = vmatprep.subr.mxu0 0.0
  %1026 = vmatpush1.msra.mxu0 0.0
  %1027 = vmatprep.subr.mxu0 0.0
  %1028 = vmatpush1.msra.mxu0 0.0
  %1029 = vmatprep.subr.mxu0 0.0
  %1030 = vmatpush1.msra.mxu0 0.0
  %1031 = vmatprep.subr.mxu0 0.0
  %1032 = vmatpush1.msra.mxu0 0.0
  %1033 = vmatprep.subr.mxu0 0.0
  %1034 = vmatpush1.msra.mxu0 0.0
  %1035 = vmatprep.subr.mxu0 0.0
  %1036 = vmatpush1.msra.mxu0 0.0
  %1037 = vmatprep.subr.mxu0 0.0
  %1038 = vmatpush1.msra.mxu0 0.0
  %1039 = vmatprep.subr.mxu0 0.0
  %1040 = vmatpush1.msra.mxu0 0.0
  %1041 = vmatprep.subr.mxu0 0.0
  %1042 = vmatpush1.msra.mxu0 0.0
  %1043 = vmatprep.subr.mxu0 0.0
  %1044 = vmatpush1.msra.mxu0 0.0
  %1045 = vmatprep.subr.mxu0 0.0
  %1046 = vmatpush1.msra.mxu0 0.0
  %1047 = vmatprep.subr.mxu0 0.0
  %1048 = vmatpush1.msra.mxu0 0.0
  %1049 = vmatprep.subr.mxu0 0.0
  %1050 = vmatpush1.msra.mxu0 0.0
  %1051 = vmatprep.subr.mxu0 0.0
  %1052 = vmatpush1.msra.mxu0 0.0
  %1053 = vmatprep.subr.mxu0 0.0
  %1054 = vmatpush1.msra.mxu0 0.0
  %1055 = vmatprep.subr.mxu0 0.0
  %1056 = vmatpush1.msra.mxu0 0.0
  %1057 = vmatprep.subr.mxu0 0.0
  %1058 = vmatpush1.msra.mxu0 0.0
  %1059 = vmatprep.subr.mxu0 0.0
  %1060 = vmatpush1.msra.mxu0 0.0
  %1061 = vmatprep.subr.mxu0 0.0
  %1062 = vmatpush1.msra.mxu0 0.0
  %1063 = vmatprep.subr.mxu0 0.0
  %1064 = vmatpush1.msra.mxu0 0.0
  %1065 = vmatprep.mubr.f32.mxu0 0.0
  %1066 = vmatmul.mubr.f32.gmra.mrb[0].mxu0 %v999
  %v1067 = vpop.f32.mrb[0].mxu0
  %v1068 = vadd.f32 %v50, %v1067
  %v1069 = vpop.f32.mrb[0].mxu0
  %1070 = vdwg.mxu0
  %v1071 = vmul.f32 %v996, 0.5
  %v1072 = vmul.f32 %v1068, 0.5
  %v1073 = vadd.f32 %v1071, %v1072
  %v1074 = vtanh.pop %v1073
  %v1076 = vsel %vm52, %v1074, 0
  %1078 = vmatprep.subr.mxu0 0.0
  %1079 = vmatpush1.msra.mxu0 %v37
  %1080 = vmatprep.subr.mxu0 0.0
  %1081 = vmatpush1.msra.mxu0 %v38
  %1082 = vmatprep.subr.mxu0 0.0
  %1083 = vmatpush1.msra.mxu0 %v39
  %1084 = vmatprep.subr.mxu0 0.0
  %1085 = vmatpush1.msra.mxu0 %v40
  %1086 = vmatprep.subr.mxu0 0.0
  %1087 = vmatpush1.msra.mxu0 0.0
  %1088 = vmatprep.subr.mxu0 0.0
  %1089 = vmatpush1.msra.mxu0 0.0
  %1090 = vmatprep.subr.mxu0 0.0
  %1091 = vmatpush1.msra.mxu0 0.0
  %1092 = vmatprep.subr.mxu0 0.0
  %1093 = vmatpush1.msra.mxu0 0.0
  %1094 = vmatprep.subr.mxu0 0.0
  %1095 = vmatpush1.msra.mxu0 0.0
  %1096 = vmatprep.subr.mxu0 0.0
  %1097 = vmatpush1.msra.mxu0 0.0
  %1098 = vmatprep.subr.mxu0 0.0
  %1099 = vmatpush1.msra.mxu0 0.0
  %1100 = vmatprep.subr.mxu0 0.0
  %1101 = vmatpush1.msra.mxu0 0.0
  %1102 = vmatprep.subr.mxu0 0.0
  %1103 = vmatpush1.msra.mxu0 0.0
  %1104 = vmatprep.subr.mxu0 0.0
  %1105 = vmatpush1.msra.mxu0 0.0
  %1106 = vmatprep.subr.mxu0 0.0
  %1107 = vmatpush1.msra.mxu0 0.0
  %1108 = vmatprep.subr.mxu0 0.0
  %1109 = vmatpush1.msra.mxu0 0.0
  %1110 = vmatprep.subr.mxu0 0.0
  %1111 = vmatpush1.msra.mxu0 0.0
  %1112 = vmatprep.subr.mxu0 0.0
  %1113 = vmatpush1.msra.mxu0 0.0
  %1114 = vmatprep.subr.mxu0 0.0
  %1115 = vmatpush1.msra.mxu0 0.0
  %1116 = vmatprep.subr.mxu0 0.0
  %1117 = vmatpush1.msra.mxu0 0.0
  %1118 = vmatprep.subr.mxu0 0.0
  %1119 = vmatpush1.msra.mxu0 0.0
  %1120 = vmatprep.subr.mxu0 0.0
  %1121 = vmatpush1.msra.mxu0 0.0
  %1122 = vmatprep.subr.mxu0 0.0
  %1123 = vmatpush1.msra.mxu0 0.0
  %1124 = vmatprep.subr.mxu0 0.0
  %1125 = vmatpush1.msra.mxu0 0.0
  %1126 = vmatprep.subr.mxu0 0.0
  %1127 = vmatpush1.msra.mxu0 0.0
  %1128 = vmatprep.subr.mxu0 0.0
  %1129 = vmatpush1.msra.mxu0 0.0
  %1130 = vmatprep.subr.mxu0 0.0
  %1131 = vmatpush1.msra.mxu0 0.0
  %1132 = vmatprep.subr.mxu0 0.0
  %1133 = vmatpush1.msra.mxu0 0.0
  %1134 = vmatprep.subr.mxu0 0.0
  %1135 = vmatpush1.msra.mxu0 0.0
  %1136 = vmatprep.subr.mxu0 0.0
  %1137 = vmatpush1.msra.mxu0 0.0
  %1138 = vmatprep.subr.mxu0 0.0
  %1139 = vmatpush1.msra.mxu0 0.0
  %1140 = vmatprep.subr.mxu0 0.0
  %1141 = vmatpush1.msra.mxu0 0.0
  %1142 = vmatprep.mubr.f32.mxu0 0.0
  %1143 = vmatmul.mubr.f32.gmra.mrb[0].mxu0 %v1076
  %v1144 = vpop.f32.mrb[0].mxu0
  %v1145 = vadd.f32 %v134, %v1144
  %v1146 = vpop.f32.mrb[0].mxu0
  %1147 = vdwg.mxu0
  %s1148 = scalar_lea.vmem %s0, 32
  %v1149 = vld [vmem:[%s1148] sm:$0xff]
  %v1150 = vsub.f32 %v1145, %v1149
  %s1151 = scalar_lea.vmem %s7, 32
  %1152 = vst.msk [vmem:[%s1151] sm:$0xff] %vm211, %v1150
  %v1154 = vsel %vm211, %v1150, 0
  %1156 = vmatprep.subr.mxu0 0.0
  %1157 = vmatpush1.msra.mxu0 %v218
  %1158 = vmatprep.subr.mxu0 0.0
  %1159 = vmatpush1.msra.mxu0 0.0
  %1160 = vmatprep.subr.mxu0 0.0
  %1161 = vmatpush1.msra.mxu0 0.0
  %1162 = vmatprep.subr.mxu0 0.0
  %1163 = vmatpush1.msra.mxu0 0.0
  %1164 = vmatprep.subr.mxu0 0.0
  %1165 = vmatpush1.msra.mxu0 0.0
  %1166 = vmatprep.subr.mxu0 0.0
  %1167 = vmatpush1.msra.mxu0 0.0
  %1168 = vmatprep.subr.mxu0 0.0
  %1169 = vmatpush1.msra.mxu0 0.0
  %1170 = vmatprep.subr.mxu0 0.0
  %1171 = vmatpush1.msra.mxu0 0.0
  %1172 = vmatprep.subr.mxu0 0.0
  %1173 = vmatpush1.msra.mxu0 0.0
  %1174 = vmatprep.subr.mxu0 0.0
  %1175 = vmatpush1.msra.mxu0 0.0
  %1176 = vmatprep.subr.mxu0 0.0
  %1177 = vmatpush1.msra.mxu0 0.0
  %1178 = vmatprep.subr.mxu0 0.0
  %1179 = vmatpush1.msra.mxu0 0.0
  %1180 = vmatprep.subr.mxu0 0.0
  %1181 = vmatpush1.msra.mxu0 0.0
  %1182 = vmatprep.subr.mxu0 0.0
  %1183 = vmatpush1.msra.mxu0 0.0
  %1184 = vmatprep.subr.mxu0 0.0
  %1185 = vmatpush1.msra.mxu0 0.0
  %1186 = vmatprep.subr.mxu0 0.0
  %1187 = vmatpush1.msra.mxu0 0.0
  %1188 = vmatprep.subr.mxu0 0.0
  %1189 = vmatpush1.msra.mxu0 0.0
  %1190 = vmatprep.subr.mxu0 0.0
  %1191 = vmatpush1.msra.mxu0 0.0
  %1192 = vmatprep.subr.mxu0 0.0
  %1193 = vmatpush1.msra.mxu0 0.0
  %1194 = vmatprep.subr.mxu0 0.0
  %1195 = vmatpush1.msra.mxu0 0.0
  %1196 = vmatprep.subr.mxu0 0.0
  %1197 = vmatpush1.msra.mxu0 0.0
  %1198 = vmatprep.subr.mxu0 0.0
  %1199 = vmatpush1.msra.mxu0 0.0
  %1200 = vmatprep.subr.mxu0 0.0
  %1201 = vmatpush1.msra.mxu0 0.0
  %1202 = vmatprep.subr.mxu0 0.0
  %1203 = vmatpush1.msra.mxu0 0.0
  %1204 = vmatprep.subr.mxu0 0.0
  %1205 = vmatpush1.msra.mxu0 0.0
  %1206 = vmatprep.subr.mxu0 0.0
  %1207 = vmatpush1.msra.mxu0 0.0
  %1208 = vmatprep.subr.mxu0 0.0
  %1209 = vmatpush1.msra.mxu0 0.0
  %1210 = vmatprep.subr.mxu0 0.0
  %1211 = vmatpush1.msra.mxu0 0.0
  %1212 = vmatprep.subr.mxu0 0.0
  %1213 = vmatpush1.msra.mxu0 0.0
  %1214 = vmatprep.subr.mxu0 0.0
  %1215 = vmatpush1.msra.mxu0 0.0
  %1216 = vmatprep.subr.mxu0 0.0
  %1217 = vmatpush1.msra.mxu0 0.0
  %1218 = vmatprep.subr.mxu0 0.0
  %1219 = vmatpush1.msra.mxu0 0.0
  %1220 = vmatprep.mubr.f32.mxu0 0.0
  %1221 = vmatmul.mubr.f32.gmra.mrb[0].mxu0 %v1154
  %v1222 = vpop.f32.mrb[0].mxu0
  %v1223 = vadd.f32 0.0, %v1222
  %v1224 = vpop.f32.mrb[0].mxu0
  %1225 = vdwg.mxu0
  %v1226 = vmul.f32 %v1074, %v1074
  %v1227 = vsub.f32 1.0, %v1226
  %v1228 = vmul.f32 %v1227, 0.1
  %v1229 = vmul.f32 %v1228, %v1223
  %v1230 = vsub.f32 %v1073, %v1229
  %v1231 = vtanh.pop %v1230
  %v1233 = vsel %vm52, %v1231, 0
  %1235 = vmatprep.subr.mxu0 0.0
  %1236 = vmatpush1.msra.mxu0 %v33
  %1237 = vmatprep.subr.mxu0 0.0
  %1238 = vmatpush1.msra.mxu0 %v34
  %1239 = vmatprep.subr.mxu0 0.0
  %1240 = vmatpush1.msra.mxu0 %v35
  %1241 = vmatprep.subr.mxu0 0.0
  %1242 = vmatpush1.msra.mxu0 %v36
  %1243 = vmatprep.subr.mxu0 0.0
  %1244 = vmatpush1.msra.mxu0 0.0
  %1245 = vmatprep.subr.mxu0 0.0
  %1246 = vmatpush1.msra.mxu0 0.0
  %1247 = vmatprep.subr.mxu0 0.0
  %1248 = vmatpush1.msra.mxu0 0.0
  %1249 = vmatprep.subr.mxu0 0.0
  %1250 = vmatpush1.msra.mxu0 0.0
  %1251 = vmatprep.subr.mxu0 0.0
  %1252 = vmatpush1.msra.mxu0 0.0
  %1253 = vmatprep.subr.mxu0 0.0
  %1254 = vmatpush1.msra.mxu0 0.0
  %1255 = vmatprep.subr.mxu0 0.0
  %1256 = vmatpush1.msra.mxu0 0.0
  %1257 = vmatprep.subr.mxu0 0.0
  %1258 = vmatpush1.msra.mxu0 0.0
  %1259 = vmatprep.subr.mxu0 0.0
  %1260 = vmatpush1.msra.mxu0 0.0
  %1261 = vmatprep.subr.mxu0 0.0
  %1262 = vmatpush1.msra.mxu0 0.0
  %1263 = vmatprep.subr.mxu0 0.0
  %1264 = vmatpush1.msra.mxu0 0.0
  %1265 = vmatprep.subr.mxu0 0.0
  %1266 = vmatpush1.msra.mxu0 0.0
  %1267 = vmatprep.subr.mxu0 0.0
  %1268 = vmatpush1.msra.mxu0 0.0
  %1269 = vmatprep.subr.mxu0 0.0
  %1270 = vmatpush1.msra.mxu0 0.0
  %1271 = vmatprep.subr.mxu0 0.0
  %1272 = vmatpush1.msra.mxu0 0.0
  %1273 = vmatprep.subr.mxu0 0.0
  %1274 = vmatpush1.msra.mxu0 0.0
  %1275 = vmatprep.subr.mxu0 0.0
  %1276 = vmatpush1.msra.mxu0 0.0
  %1277 = vmatprep.subr.mxu0 0.0
  %1278 = vmatpush1.msra.mxu0 0.0
  %1279 = vmatprep.subr.mxu0 0.0
  %1280 = vmatpush1.msra.mxu0 0.0
  %1281 = vmatprep.subr.mxu0 0.0
  %1282 = vmatpush1.msra.mxu0 0.0
  %1283 = vmatprep.subr.mxu0 0.0
  %1284 = vmatpush1.msra.mxu0 0.0
  %1285 = vmatprep.subr.mxu0 0.0
  %1286 = vmatpush1.msra.mxu0 0.0
  %1287 = vmatprep.subr.mxu0 0.0
  %1288 = vmatpush1.msra.mxu0 0.0
  %1289 = vmatprep.subr.mxu0 0.0
  %1290 = vmatpush1.msra.mxu0 0.0
  %1291 = vmatprep.subr.mxu0 0.0
  %1292 = vmatpush1.msra.mxu0 0.0
  %1293 = vmatprep.subr.mxu0 0.0
  %1294 = vmatpush1.msra.mxu0 0.0
  %1295 = vmatprep.subr.mxu0 0.0
  %1296 = vmatpush1.msra.mxu0 0.0
  %1297 = vmatprep.subr.mxu0 0.0
  %1298 = vmatpush1.msra.mxu0 0.0
  %1299 = vmatprep.mubr.f32.mxu0 0.0
  %1300 = vmatmul.mubr.f32.gmra.mrb[0].mxu0 %v1233
  %v1301 = vpop.f32.mrb[0].mxu0
  %v1302 = vadd.f32 %v50, %v1301
  %v1303 = vpop.f32.mrb[0].mxu0
  %1304 = vdwg.mxu0
  %v1305 = vmul.f32 %v1230, 0.5
  %v1306 = vmul.f32 %v1302, 0.5
  %v1307 = vadd.f32 %v1305, %v1306
  %v1308 = vtanh.pop %v1307
  %v1310 = vsel %vm52, %v1308, 0
  %1312 = vmatprep.subr.mxu0 0.0
  %1313 = vmatpush1.msra.mxu0 %v37
  %1314 = vmatprep.subr.mxu0 0.0
  %1315 = vmatpush1.msra.mxu0 %v38
  %1316 = vmatprep.subr.mxu0 0.0
  %1317 = vmatpush1.msra.mxu0 %v39
  %1318 = vmatprep.subr.mxu0 0.0
  %1319 = vmatpush1.msra.mxu0 %v40
  %1320 = vmatprep.subr.mxu0 0.0
  %1321 = vmatpush1.msra.mxu0 0.0
  %1322 = vmatprep.subr.mxu0 0.0
  %1323 = vmatpush1.msra.mxu0 0.0
  %1324 = vmatprep.subr.mxu0 0.0
  %1325 = vmatpush1.msra.mxu0 0.0
  %1326 = vmatprep.subr.mxu0 0.0
  %1327 = vmatpush1.msra.mxu0 0.0
  %1328 = vmatprep.subr.mxu0 0.0
  %1329 = vmatpush1.msra.mxu0 0.0
  %1330 = vmatprep.subr.mxu0 0.0
  %1331 = vmatpush1.msra.mxu0 0.0
  %1332 = vmatprep.subr.mxu0 0.0
  %1333 = vmatpush1.msra.mxu0 0.0
  %1334 = vmatprep.subr.mxu0 0.0
  %1335 = vmatpush1.msra.mxu0 0.0
  %1336 = vmatprep.subr.mxu0 0.0
  %1337 = vmatpush1.msra.mxu0 0.0
  %1338 = vmatprep.subr.mxu0 0.0
  %1339 = vmatpush1.msra.mxu0 0.0
  %1340 = vmatprep.subr.mxu0 0.0
  %1341 = vmatpush1.msra.mxu0 0.0
  %1342 = vmatprep.subr.mxu0 0.0
  %1343 = vmatpush1.msra.mxu0 0.0
  %1344 = vmatprep.subr.mxu0 0.0
  %1345 = vmatpush1.msra.mxu0 0.0
  %1346 = vmatprep.subr.mxu0 0.0
  %1347 = vmatpush1.msra.mxu0 0.0
  %1348 = vmatprep.subr.mxu0 0.0
  %1349 = vmatpush1.msra.mxu0 0.0
  %1350 = vmatprep.subr.mxu0 0.0
  %1351 = vmatpush1.msra.mxu0 0.0
  %1352 = vmatprep.subr.mxu0 0.0
  %1353 = vmatpush1.msra.mxu0 0.0
  %1354 = vmatprep.subr.mxu0 0.0
  %1355 = vmatpush1.msra.mxu0 0.0
  %1356 = vmatprep.subr.mxu0 0.0
  %1357 = vmatpush1.msra.mxu0 0.0
  %1358 = vmatprep.subr.mxu0 0.0
  %1359 = vmatpush1.msra.mxu0 0.0
  %1360 = vmatprep.subr.mxu0 0.0
  %1361 = vmatpush1.msra.mxu0 0.0
  %1362 = vmatprep.subr.mxu0 0.0
  %1363 = vmatpush1.msra.mxu0 0.0
  %1364 = vmatprep.subr.mxu0 0.0
  %1365 = vmatpush1.msra.mxu0 0.0
  %1366 = vmatprep.subr.mxu0 0.0
  %1367 = vmatpush1.msra.mxu0 0.0
  %1368 = vmatprep.subr.mxu0 0.0
  %1369 = vmatpush1.msra.mxu0 0.0
  %1370 = vmatprep.subr.mxu0 0.0
  %1371 = vmatpush1.msra.mxu0 0.0
  %1372 = vmatprep.subr.mxu0 0.0
  %1373 = vmatpush1.msra.mxu0 0.0
  %1374 = vmatprep.subr.mxu0 0.0
  %1375 = vmatpush1.msra.mxu0 0.0
  %1376 = vmatprep.mubr.f32.mxu0 0.0
  %1377 = vmatmul.mubr.f32.gmra.mrb[0].mxu0 %v1310
  %v1378 = vpop.f32.mrb[0].mxu0
  %v1379 = vadd.f32 %v134, %v1378
  %v1380 = vpop.f32.mrb[0].mxu0
  %1381 = vdwg.mxu0
  %s1382 = scalar_lea.vmem %s0, 40
  %v1383 = vld [vmem:[%s1382] sm:$0xff]
  %v1384 = vsub.f32 %v1379, %v1383
  %s1385 = scalar_lea.vmem %s7, 40
  %1386 = vst.msk [vmem:[%s1385] sm:$0xff] %vm211, %v1384
  %v1388 = vsel %vm211, %v1384, 0
  %1390 = vmatprep.subr.mxu0 0.0
  %1391 = vmatpush1.msra.mxu0 %v218
  %1392 = vmatprep.subr.mxu0 0.0
  %1393 = vmatpush1.msra.mxu0 0.0
  %1394 = vmatprep.subr.mxu0 0.0
  %1395 = vmatpush1.msra.mxu0 0.0
  %1396 = vmatprep.subr.mxu0 0.0
  %1397 = vmatpush1.msra.mxu0 0.0
  %1398 = vmatprep.subr.mxu0 0.0
  %1399 = vmatpush1.msra.mxu0 0.0
  %1400 = vmatprep.subr.mxu0 0.0
  %1401 = vmatpush1.msra.mxu0 0.0
  %1402 = vmatprep.subr.mxu0 0.0
  %1403 = vmatpush1.msra.mxu0 0.0
  %1404 = vmatprep.subr.mxu0 0.0
  %1405 = vmatpush1.msra.mxu0 0.0
  %1406 = vmatprep.subr.mxu0 0.0
  %1407 = vmatpush1.msra.mxu0 0.0
  %1408 = vmatprep.subr.mxu0 0.0
  %1409 = vmatpush1.msra.mxu0 0.0
  %1410 = vmatprep.subr.mxu0 0.0
  %1411 = vmatpush1.msra.mxu0 0.0
  %1412 = vmatprep.subr.mxu0 0.0
  %1413 = vmatpush1.msra.mxu0 0.0
  %1414 = vmatprep.subr.mxu0 0.0
  %1415 = vmatpush1.msra.mxu0 0.0
  %1416 = vmatprep.subr.mxu0 0.0
  %1417 = vmatpush1.msra.mxu0 0.0
  %1418 = vmatprep.subr.mxu0 0.0
  %1419 = vmatpush1.msra.mxu0 0.0
  %1420 = vmatprep.subr.mxu0 0.0
  %1421 = vmatpush1.msra.mxu0 0.0
  %1422 = vmatprep.subr.mxu0 0.0
  %1423 = vmatpush1.msra.mxu0 0.0
  %1424 = vmatprep.subr.mxu0 0.0
  %1425 = vmatpush1.msra.mxu0 0.0
  %1426 = vmatprep.subr.mxu0 0.0
  %1427 = vmatpush1.msra.mxu0 0.0
  %1428 = vmatprep.subr.mxu0 0.0
  %1429 = vmatpush1.msra.mxu0 0.0
  %1430 = vmatprep.subr.mxu0 0.0
  %1431 = vmatpush1.msra.mxu0 0.0
  %1432 = vmatprep.subr.mxu0 0.0
  %1433 = vmatpush1.msra.mxu0 0.0
  %1434 = vmatprep.subr.mxu0 0.0
  %1435 = vmatpush1.msra.mxu0 0.0
  %1436 = vmatprep.subr.mxu0 0.0
  %1437 = vmatpush1.msra.mxu0 0.0
  %1438 = vmatprep.subr.mxu0 0.0
  %1439 = vmatpush1.msra.mxu0 0.0
  %1440 = vmatprep.subr.mxu0 0.0
  %1441 = vmatpush1.msra.mxu0 0.0
  %1442 = vmatprep.subr.mxu0 0.0
  %1443 = vmatpush1.msra.mxu0 0.0
  %1444 = vmatprep.subr.mxu0 0.0
  %1445 = vmatpush1.msra.mxu0 0.0
  %1446 = vmatprep.subr.mxu0 0.0
  %1447 = vmatpush1.msra.mxu0 0.0
  %1448 = vmatprep.subr.mxu0 0.0
  %1449 = vmatpush1.msra.mxu0 0.0
  %1450 = vmatprep.subr.mxu0 0.0
  %1451 = vmatpush1.msra.mxu0 0.0
  %1452 = vmatprep.subr.mxu0 0.0
  %1453 = vmatpush1.msra.mxu0 0.0
  %1454 = vmatprep.mubr.f32.mxu0 0.0
  %1455 = vmatmul.mubr.f32.gmra.mrb[0].mxu0 %v1388
  %v1456 = vpop.f32.mrb[0].mxu0
  %v1457 = vadd.f32 0.0, %v1456
  %v1458 = vpop.f32.mrb[0].mxu0
  %1459 = vdwg.mxu0
  %v1460 = vmul.f32 %v1308, %v1308
  %v1461 = vsub.f32 1.0, %v1460
  %v1462 = vmul.f32 %v1461, 0.1
  %v1463 = vmul.f32 %v1462, %v1457
  %v1464 = vsub.f32 %v1307, %v1463
  %v1465 = vtanh.pop %v1464
  %v1467 = vsel %vm52, %v1465, 0
  %1469 = vmatprep.subr.mxu0 0.0
  %1470 = vmatpush1.msra.mxu0 %v33
  %1471 = vmatprep.subr.mxu0 0.0
  %1472 = vmatpush1.msra.mxu0 %v34
  %1473 = vmatprep.subr.mxu0 0.0
  %1474 = vmatpush1.msra.mxu0 %v35
  %1475 = vmatprep.subr.mxu0 0.0
  %1476 = vmatpush1.msra.mxu0 %v36
  %1477 = vmatprep.subr.mxu0 0.0
  %1478 = vmatpush1.msra.mxu0 0.0
  %1479 = vmatprep.subr.mxu0 0.0
  %1480 = vmatpush1.msra.mxu0 0.0
  %1481 = vmatprep.subr.mxu0 0.0
  %1482 = vmatpush1.msra.mxu0 0.0
  %1483 = vmatprep.subr.mxu0 0.0
  %1484 = vmatpush1.msra.mxu0 0.0
  %1485 = vmatprep.subr.mxu0 0.0
  %1486 = vmatpush1.msra.mxu0 0.0
  %1487 = vmatprep.subr.mxu0 0.0
  %1488 = vmatpush1.msra.mxu0 0.0
  %1489 = vmatprep.subr.mxu0 0.0
  %1490 = vmatpush1.msra.mxu0 0.0
  %1491 = vmatprep.subr.mxu0 0.0
  %1492 = vmatpush1.msra.mxu0 0.0
  %1493 = vmatprep.subr.mxu0 0.0
  %1494 = vmatpush1.msra.mxu0 0.0
  %1495 = vmatprep.subr.mxu0 0.0
  %1496 = vmatpush1.msra.mxu0 0.0
  %1497 = vmatprep.subr.mxu0 0.0
  %1498 = vmatpush1.msra.mxu0 0.0
  %1499 = vmatprep.subr.mxu0 0.0
  %1500 = vmatpush1.msra.mxu0 0.0
  %1501 = vmatprep.subr.mxu0 0.0
  %1502 = vmatpush1.msra.mxu0 0.0
  %1503 = vmatprep.subr.mxu0 0.0
  %1504 = vmatpush1.msra.mxu0 0.0
  %1505 = vmatprep.subr.mxu0 0.0
  %1506 = vmatpush1.msra.mxu0 0.0
  %1507 = vmatprep.subr.mxu0 0.0
  %1508 = vmatpush1.msra.mxu0 0.0
  %1509 = vmatprep.subr.mxu0 0.0
  %1510 = vmatpush1.msra.mxu0 0.0
  %1511 = vmatprep.subr.mxu0 0.0
  %1512 = vmatpush1.msra.mxu0 0.0
  %1513 = vmatprep.subr.mxu0 0.0
  %1514 = vmatpush1.msra.mxu0 0.0
  %1515 = vmatprep.subr.mxu0 0.0
  %1516 = vmatpush1.msra.mxu0 0.0
  %1517 = vmatprep.subr.mxu0 0.0
  %1518 = vmatpush1.msra.mxu0 0.0
  %1519 = vmatprep.subr.mxu0 0.0
  %1520 = vmatpush1.msra.mxu0 0.0
  %1521 = vmatprep.subr.mxu0 0.0
  %1522 = vmatpush1.msra.mxu0 0.0
  %1523 = vmatprep.subr.mxu0 0.0
  %1524 = vmatpush1.msra.mxu0 0.0
  %1525 = vmatprep.subr.mxu0 0.0
  %1526 = vmatpush1.msra.mxu0 0.0
  %1527 = vmatprep.subr.mxu0 0.0
  %1528 = vmatpush1.msra.mxu0 0.0
  %1529 = vmatprep.subr.mxu0 0.0
  %1530 = vmatpush1.msra.mxu0 0.0
  %1531 = vmatprep.subr.mxu0 0.0
  %1532 = vmatpush1.msra.mxu0 0.0
  %1533 = vmatprep.mubr.f32.mxu0 0.0
  %1534 = vmatmul.mubr.f32.gmra.mrb[0].mxu0 %v1467
  %v1535 = vpop.f32.mrb[0].mxu0
  %v1536 = vadd.f32 %v50, %v1535
  %v1537 = vpop.f32.mrb[0].mxu0
  %1538 = vdwg.mxu0
  %v1539 = vmul.f32 %v1464, 0.5
  %v1540 = vmul.f32 %v1536, 0.5
  %v1541 = vadd.f32 %v1539, %v1540
  %v1542 = vtanh.pop %v1541
  %v1544 = vsel %vm52, %v1542, 0
  %1546 = vmatprep.subr.mxu0 0.0
  %1547 = vmatpush1.msra.mxu0 %v37
  %1548 = vmatprep.subr.mxu0 0.0
  %1549 = vmatpush1.msra.mxu0 %v38
  %1550 = vmatprep.subr.mxu0 0.0
  %1551 = vmatpush1.msra.mxu0 %v39
  %1552 = vmatprep.subr.mxu0 0.0
  %1553 = vmatpush1.msra.mxu0 %v40
  %1554 = vmatprep.subr.mxu0 0.0
  %1555 = vmatpush1.msra.mxu0 0.0
  %1556 = vmatprep.subr.mxu0 0.0
  %1557 = vmatpush1.msra.mxu0 0.0
  %1558 = vmatprep.subr.mxu0 0.0
  %1559 = vmatpush1.msra.mxu0 0.0
  %1560 = vmatprep.subr.mxu0 0.0
  %1561 = vmatpush1.msra.mxu0 0.0
  %1562 = vmatprep.subr.mxu0 0.0
  %1563 = vmatpush1.msra.mxu0 0.0
  %1564 = vmatprep.subr.mxu0 0.0
  %1565 = vmatpush1.msra.mxu0 0.0
  %1566 = vmatprep.subr.mxu0 0.0
  %1567 = vmatpush1.msra.mxu0 0.0
  %1568 = vmatprep.subr.mxu0 0.0
  %1569 = vmatpush1.msra.mxu0 0.0
  %1570 = vmatprep.subr.mxu0 0.0
  %1571 = vmatpush1.msra.mxu0 0.0
  %1572 = vmatprep.subr.mxu0 0.0
  %1573 = vmatpush1.msra.mxu0 0.0
  %1574 = vmatprep.subr.mxu0 0.0
  %1575 = vmatpush1.msra.mxu0 0.0
  %1576 = vmatprep.subr.mxu0 0.0
  %1577 = vmatpush1.msra.mxu0 0.0
  %1578 = vmatprep.subr.mxu0 0.0
  %1579 = vmatpush1.msra.mxu0 0.0
  %1580 = vmatprep.subr.mxu0 0.0
  %1581 = vmatpush1.msra.mxu0 0.0
  %1582 = vmatprep.subr.mxu0 0.0
  %1583 = vmatpush1.msra.mxu0 0.0
  %1584 = vmatprep.subr.mxu0 0.0
  %1585 = vmatpush1.msra.mxu0 0.0
  %1586 = vmatprep.subr.mxu0 0.0
  %1587 = vmatpush1.msra.mxu0 0.0
  %1588 = vmatprep.subr.mxu0 0.0
  %1589 = vmatpush1.msra.mxu0 0.0
  %1590 = vmatprep.subr.mxu0 0.0
  %1591 = vmatpush1.msra.mxu0 0.0
  %1592 = vmatprep.subr.mxu0 0.0
  %1593 = vmatpush1.msra.mxu0 0.0
  %1594 = vmatprep.subr.mxu0 0.0
  %1595 = vmatpush1.msra.mxu0 0.0
  %1596 = vmatprep.subr.mxu0 0.0
  %1597 = vmatpush1.msra.mxu0 0.0
  %1598 = vmatprep.subr.mxu0 0.0
  %1599 = vmatpush1.msra.mxu0 0.0
  %1600 = vmatprep.subr.mxu0 0.0
  %1601 = vmatpush1.msra.mxu0 0.0
  %1602 = vmatprep.subr.mxu0 0.0
  %1603 = vmatpush1.msra.mxu0 0.0
  %1604 = vmatprep.subr.mxu0 0.0
  %1605 = vmatpush1.msra.mxu0 0.0
  %1606 = vmatprep.subr.mxu0 0.0
  %1607 = vmatpush1.msra.mxu0 0.0
  %1608 = vmatprep.subr.mxu0 0.0
  %1609 = vmatpush1.msra.mxu0 0.0
  %1610 = vmatprep.mubr.f32.mxu0 0.0
  %1611 = vmatmul.mubr.f32.gmra.mrb[0].mxu0 %v1544
  %v1612 = vpop.f32.mrb[0].mxu0
  %v1613 = vadd.f32 %v134, %v1612
  %v1614 = vpop.f32.mrb[0].mxu0
  %1615 = vdwg.mxu0
  %s1616 = scalar_lea.vmem %s0, 48
  %v1617 = vld [vmem:[%s1616] sm:$0xff]
  %v1618 = vsub.f32 %v1613, %v1617
  %s1619 = scalar_lea.vmem %s7, 48
  %1620 = vst.msk [vmem:[%s1619] sm:$0xff] %vm211, %v1618
  %v1622 = vsel %vm211, %v1618, 0
  %1624 = vmatprep.subr.mxu0 0.0
  %1625 = vmatpush1.msra.mxu0 %v218
  %1626 = vmatprep.subr.mxu0 0.0
  %1627 = vmatpush1.msra.mxu0 0.0
  %1628 = vmatprep.subr.mxu0 0.0
  %1629 = vmatpush1.msra.mxu0 0.0
  %1630 = vmatprep.subr.mxu0 0.0
  %1631 = vmatpush1.msra.mxu0 0.0
  %1632 = vmatprep.subr.mxu0 0.0
  %1633 = vmatpush1.msra.mxu0 0.0
  %1634 = vmatprep.subr.mxu0 0.0
  %1635 = vmatpush1.msra.mxu0 0.0
  %1636 = vmatprep.subr.mxu0 0.0
  %1637 = vmatpush1.msra.mxu0 0.0
  %1638 = vmatprep.subr.mxu0 0.0
  %1639 = vmatpush1.msra.mxu0 0.0
  %1640 = vmatprep.subr.mxu0 0.0
  %1641 = vmatpush1.msra.mxu0 0.0
  %1642 = vmatprep.subr.mxu0 0.0
  %1643 = vmatpush1.msra.mxu0 0.0
  %1644 = vmatprep.subr.mxu0 0.0
  %1645 = vmatpush1.msra.mxu0 0.0
  %1646 = vmatprep.subr.mxu0 0.0
  %1647 = vmatpush1.msra.mxu0 0.0
  %1648 = vmatprep.subr.mxu0 0.0
  %1649 = vmatpush1.msra.mxu0 0.0
  %1650 = vmatprep.subr.mxu0 0.0
  %1651 = vmatpush1.msra.mxu0 0.0
  %1652 = vmatprep.subr.mxu0 0.0
  %1653 = vmatpush1.msra.mxu0 0.0
  %1654 = vmatprep.subr.mxu0 0.0
  %1655 = vmatpush1.msra.mxu0 0.0
  %1656 = vmatprep.subr.mxu0 0.0
  %1657 = vmatpush1.msra.mxu0 0.0
  %1658 = vmatprep.subr.mxu0 0.0
  %1659 = vmatpush1.msra.mxu0 0.0
  %1660 = vmatprep.subr.mxu0 0.0
  %1661 = vmatpush1.msra.mxu0 0.0
  %1662 = vmatprep.subr.mxu0 0.0
  %1663 = vmatpush1.msra.mxu0 0.0
  %1664 = vmatprep.subr.mxu0 0.0
  %1665 = vmatpush1.msra.mxu0 0.0
  %1666 = vmatprep.subr.mxu0 0.0
  %1667 = vmatpush1.msra.mxu0 0.0
  %1668 = vmatprep.subr.mxu0 0.0
  %1669 = vmatpush1.msra.mxu0 0.0
  %1670 = vmatprep.subr.mxu0 0.0
  %1671 = vmatpush1.msra.mxu0 0.0
  %1672 = vmatprep.subr.mxu0 0.0
  %1673 = vmatpush1.msra.mxu0 0.0
  %1674 = vmatprep.subr.mxu0 0.0
  %1675 = vmatpush1.msra.mxu0 0.0
  %1676 = vmatprep.subr.mxu0 0.0
  %1677 = vmatpush1.msra.mxu0 0.0
  %1678 = vmatprep.subr.mxu0 0.0
  %1679 = vmatpush1.msra.mxu0 0.0
  %1680 = vmatprep.subr.mxu0 0.0
  %1681 = vmatpush1.msra.mxu0 0.0
  %1682 = vmatprep.subr.mxu0 0.0
  %1683 = vmatpush1.msra.mxu0 0.0
  %1684 = vmatprep.subr.mxu0 0.0
  %1685 = vmatpush1.msra.mxu0 0.0
  %1686 = vmatprep.subr.mxu0 0.0
  %1687 = vmatpush1.msra.mxu0 0.0
  %1688 = vmatprep.mubr.f32.mxu0 0.0
  %1689 = vmatmul.mubr.f32.gmra.mrb[0].mxu0 %v1622
  %v1690 = vpop.f32.mrb[0].mxu0
  %v1691 = vadd.f32 0.0, %v1690
  %v1692 = vpop.f32.mrb[0].mxu0
  %1693 = vdwg.mxu0
  %v1694 = vmul.f32 %v1542, %v1542
  %v1695 = vsub.f32 1.0, %v1694
  %v1696 = vmul.f32 %v1695, 0.1
  %v1697 = vmul.f32 %v1696, %v1691
  %v1698 = vsub.f32 %v1541, %v1697
  %v1699 = vtanh.pop %v1698
  %v1701 = vsel %vm52, %v1699, 0
  %1703 = vmatprep.subr.mxu0 0.0
  %1704 = vmatpush1.msra.mxu0 %v33
  %1705 = vmatprep.subr.mxu0 0.0
  %1706 = vmatpush1.msra.mxu0 %v34
  %1707 = vmatprep.subr.mxu0 0.0
  %1708 = vmatpush1.msra.mxu0 %v35
  %1709 = vmatprep.subr.mxu0 0.0
  %1710 = vmatpush1.msra.mxu0 %v36
  %1711 = vmatprep.subr.mxu0 0.0
  %1712 = vmatpush1.msra.mxu0 0.0
  %1713 = vmatprep.subr.mxu0 0.0
  %1714 = vmatpush1.msra.mxu0 0.0
  %1715 = vmatprep.subr.mxu0 0.0
  %1716 = vmatpush1.msra.mxu0 0.0
  %1717 = vmatprep.subr.mxu0 0.0
  %1718 = vmatpush1.msra.mxu0 0.0
  %1719 = vmatprep.subr.mxu0 0.0
  %1720 = vmatpush1.msra.mxu0 0.0
  %1721 = vmatprep.subr.mxu0 0.0
  %1722 = vmatpush1.msra.mxu0 0.0
  %1723 = vmatprep.subr.mxu0 0.0
  %1724 = vmatpush1.msra.mxu0 0.0
  %1725 = vmatprep.subr.mxu0 0.0
  %1726 = vmatpush1.msra.mxu0 0.0
  %1727 = vmatprep.subr.mxu0 0.0
  %1728 = vmatpush1.msra.mxu0 0.0
  %1729 = vmatprep.subr.mxu0 0.0
  %1730 = vmatpush1.msra.mxu0 0.0
  %1731 = vmatprep.subr.mxu0 0.0
  %1732 = vmatpush1.msra.mxu0 0.0
  %1733 = vmatprep.subr.mxu0 0.0
  %1734 = vmatpush1.msra.mxu0 0.0
  %1735 = vmatprep.subr.mxu0 0.0
  %1736 = vmatpush1.msra.mxu0 0.0
  %1737 = vmatprep.subr.mxu0 0.0
  %1738 = vmatpush1.msra.mxu0 0.0
  %1739 = vmatprep.subr.mxu0 0.0
  %1740 = vmatpush1.msra.mxu0 0.0
  %1741 = vmatprep.subr.mxu0 0.0
  %1742 = vmatpush1.msra.mxu0 0.0
  %1743 = vmatprep.subr.mxu0 0.0
  %1744 = vmatpush1.msra.mxu0 0.0
  %1745 = vmatprep.subr.mxu0 0.0
  %1746 = vmatpush1.msra.mxu0 0.0
  %1747 = vmatprep.subr.mxu0 0.0
  %1748 = vmatpush1.msra.mxu0 0.0
  %1749 = vmatprep.subr.mxu0 0.0
  %1750 = vmatpush1.msra.mxu0 0.0
  %1751 = vmatprep.subr.mxu0 0.0
  %1752 = vmatpush1.msra.mxu0 0.0
  %1753 = vmatprep.subr.mxu0 0.0
  %1754 = vmatpush1.msra.mxu0 0.0
  %1755 = vmatprep.subr.mxu0 0.0
  %1756 = vmatpush1.msra.mxu0 0.0
  %1757 = vmatprep.subr.mxu0 0.0
  %1758 = vmatpush1.msra.mxu0 0.0
  %1759 = vmatprep.subr.mxu0 0.0
  %1760 = vmatpush1.msra.mxu0 0.0
  %1761 = vmatprep.subr.mxu0 0.0
  %1762 = vmatpush1.msra.mxu0 0.0
  %1763 = vmatprep.subr.mxu0 0.0
  %1764 = vmatpush1.msra.mxu0 0.0
  %1765 = vmatprep.subr.mxu0 0.0
  %1766 = vmatpush1.msra.mxu0 0.0
  %1767 = vmatprep.mubr.f32.mxu0 0.0
  %1768 = vmatmul.mubr.f32.gmra.mrb[0].mxu0 %v1701
  %v1769 = vpop.f32.mrb[0].mxu0
  %v1770 = vadd.f32 %v50, %v1769
  %v1771 = vpop.f32.mrb[0].mxu0
  %1772 = vdwg.mxu0
  %v1773 = vmul.f32 %v1698, 0.5
  %v1774 = vmul.f32 %v1770, 0.5
  %v1775 = vadd.f32 %v1773, %v1774
  %v1776 = vtanh.pop %v1775
  %v1778 = vsel %vm52, %v1776, 0
  %1780 = vmatprep.subr.mxu0 0.0
  %1781 = vmatpush1.msra.mxu0 %v37
  %1782 = vmatprep.subr.mxu0 0.0
  %1783 = vmatpush1.msra.mxu0 %v38
  %1784 = vmatprep.subr.mxu0 0.0
  %1785 = vmatpush1.msra.mxu0 %v39
  %1786 = vmatprep.subr.mxu0 0.0
  %1787 = vmatpush1.msra.mxu0 %v40
  %1788 = vmatprep.subr.mxu0 0.0
  %1789 = vmatpush1.msra.mxu0 0.0
  %1790 = vmatprep.subr.mxu0 0.0
  %1791 = vmatpush1.msra.mxu0 0.0
  %1792 = vmatprep.subr.mxu0 0.0
  %1793 = vmatpush1.msra.mxu0 0.0
  %1794 = vmatprep.subr.mxu0 0.0
  %1795 = vmatpush1.msra.mxu0 0.0
  %1796 = vmatprep.subr.mxu0 0.0
  %1797 = vmatpush1.msra.mxu0 0.0
  %1798 = vmatprep.subr.mxu0 0.0
  %1799 = vmatpush1.msra.mxu0 0.0
  %1800 = vmatprep.subr.mxu0 0.0
  %1801 = vmatpush1.msra.mxu0 0.0
  %1802 = vmatprep.subr.mxu0 0.0
  %1803 = vmatpush1.msra.mxu0 0.0
  %1804 = vmatprep.subr.mxu0 0.0
  %1805 = vmatpush1.msra.mxu0 0.0
  %1806 = vmatprep.subr.mxu0 0.0
  %1807 = vmatpush1.msra.mxu0 0.0
  %1808 = vmatprep.subr.mxu0 0.0
  %1809 = vmatpush1.msra.mxu0 0.0
  %1810 = vmatprep.subr.mxu0 0.0
  %1811 = vmatpush1.msra.mxu0 0.0
  %1812 = vmatprep.subr.mxu0 0.0
  %1813 = vmatpush1.msra.mxu0 0.0
  %1814 = vmatprep.subr.mxu0 0.0
  %1815 = vmatpush1.msra.mxu0 0.0
  %1816 = vmatprep.subr.mxu0 0.0
  %1817 = vmatpush1.msra.mxu0 0.0
  %1818 = vmatprep.subr.mxu0 0.0
  %1819 = vmatpush1.msra.mxu0 0.0
  %1820 = vmatprep.subr.mxu0 0.0
  %1821 = vmatpush1.msra.mxu0 0.0
  %1822 = vmatprep.subr.mxu0 0.0
  %1823 = vmatpush1.msra.mxu0 0.0
  %1824 = vmatprep.subr.mxu0 0.0
  %1825 = vmatpush1.msra.mxu0 0.0
  %1826 = vmatprep.subr.mxu0 0.0
  %1827 = vmatpush1.msra.mxu0 0.0
  %1828 = vmatprep.subr.mxu0 0.0
  %1829 = vmatpush1.msra.mxu0 0.0
  %1830 = vmatprep.subr.mxu0 0.0
  %1831 = vmatpush1.msra.mxu0 0.0
  %1832 = vmatprep.subr.mxu0 0.0
  %1833 = vmatpush1.msra.mxu0 0.0
  %1834 = vmatprep.subr.mxu0 0.0
  %1835 = vmatpush1.msra.mxu0 0.0
  %1836 = vmatprep.subr.mxu0 0.0
  %1837 = vmatpush1.msra.mxu0 0.0
  %1838 = vmatprep.subr.mxu0 0.0
  %1839 = vmatpush1.msra.mxu0 0.0
  %1840 = vmatprep.subr.mxu0 0.0
  %1841 = vmatpush1.msra.mxu0 0.0
  %1842 = vmatprep.subr.mxu0 0.0
  %1843 = vmatpush1.msra.mxu0 0.0
  %1844 = vmatprep.mubr.f32.mxu0 0.0
  %1845 = vmatmul.mubr.f32.gmra.mrb[0].mxu0 %v1778
  %v1846 = vpop.f32.mrb[0].mxu0
  %v1847 = vadd.f32 %v134, %v1846
  %v1848 = vpop.f32.mrb[0].mxu0
  %1849 = vdwg.mxu0
  %s1850 = scalar_lea.vmem %s0, 56
  %v1851 = vld [vmem:[%s1850] sm:$0xff]
  %v1852 = vsub.f32 %v1847, %v1851
  %s1853 = scalar_lea.vmem %s7, 56
  %1854 = vst.msk [vmem:[%s1853] sm:$0xff] %vm211, %v1852
  %v1856 = vsel %vm211, %v1852, 0
  %1858 = vmatprep.subr.mxu0 0.0
  %1859 = vmatpush1.msra.mxu0 %v218
  %1860 = vmatprep.subr.mxu0 0.0
  %1861 = vmatpush1.msra.mxu0 0.0
  %1862 = vmatprep.subr.mxu0 0.0
  %1863 = vmatpush1.msra.mxu0 0.0
  %1864 = vmatprep.subr.mxu0 0.0
  %1865 = vmatpush1.msra.mxu0 0.0
  %1866 = vmatprep.subr.mxu0 0.0
  %1867 = vmatpush1.msra.mxu0 0.0
  %1868 = vmatprep.subr.mxu0 0.0
  %1869 = vmatpush1.msra.mxu0 0.0
  %1870 = vmatprep.subr.mxu0 0.0
  %1871 = vmatpush1.msra.mxu0 0.0
  %1872 = vmatprep.subr.mxu0 0.0
  %1873 = vmatpush1.msra.mxu0 0.0
  %1874 = vmatprep.subr.mxu0 0.0
  %1875 = vmatpush1.msra.mxu0 0.0
  %1876 = vmatprep.subr.mxu0 0.0
  %1877 = vmatpush1.msra.mxu0 0.0
  %1878 = vmatprep.subr.mxu0 0.0
  %1879 = vmatpush1.msra.mxu0 0.0
  %1880 = vmatprep.subr.mxu0 0.0
  %1881 = vmatpush1.msra.mxu0 0.0
  %1882 = vmatprep.subr.mxu0 0.0
  %1883 = vmatpush1.msra.mxu0 0.0
  %1884 = vmatprep.subr.mxu0 0.0
  %1885 = vmatpush1.msra.mxu0 0.0
  %1886 = vmatprep.subr.mxu0 0.0
  %1887 = vmatpush1.msra.mxu0 0.0
  %1888 = vmatprep.subr.mxu0 0.0
  %1889 = vmatpush1.msra.mxu0 0.0
  %1890 = vmatprep.subr.mxu0 0.0
  %1891 = vmatpush1.msra.mxu0 0.0
  %1892 = vmatprep.subr.mxu0 0.0
  %1893 = vmatpush1.msra.mxu0 0.0
  %1894 = vmatprep.subr.mxu0 0.0
  %1895 = vmatpush1.msra.mxu0 0.0
  %1896 = vmatprep.subr.mxu0 0.0
  %1897 = vmatpush1.msra.mxu0 0.0
  %1898 = vmatprep.subr.mxu0 0.0
  %1899 = vmatpush1.msra.mxu0 0.0
  %1900 = vmatprep.subr.mxu0 0.0
  %1901 = vmatpush1.msra.mxu0 0.0
  %1902 = vmatprep.subr.mxu0 0.0
  %1903 = vmatpush1.msra.mxu0 0.0
  %1904 = vmatprep.subr.mxu0 0.0
  %1905 = vmatpush1.msra.mxu0 0.0
  %1906 = vmatprep.subr.mxu0 0.0
  %1907 = vmatpush1.msra.mxu0 0.0
  %1908 = vmatprep.subr.mxu0 0.0
  %1909 = vmatpush1.msra.mxu0 0.0
  %1910 = vmatprep.subr.mxu0 0.0
  %1911 = vmatpush1.msra.mxu0 0.0
  %1912 = vmatprep.subr.mxu0 0.0
  %1913 = vmatpush1.msra.mxu0 0.0
  %1914 = vmatprep.subr.mxu0 0.0
  %1915 = vmatpush1.msra.mxu0 0.0
  %1916 = vmatprep.subr.mxu0 0.0
  %1917 = vmatpush1.msra.mxu0 0.0
  %1918 = vmatprep.subr.mxu0 0.0
  %1919 = vmatpush1.msra.mxu0 0.0
  %1920 = vmatprep.subr.mxu0 0.0
  %1921 = vmatpush1.msra.mxu0 0.0
  %1922 = vmatprep.mubr.f32.mxu0 0.0
  %1923 = vmatmul.mubr.f32.gmra.mrb[0].mxu0 %v1856
  %v1924 = vpop.f32.mrb[0].mxu0
  %v1925 = vadd.f32 0.0, %v1924
  %v1926 = vpop.f32.mrb[0].mxu0
  %1927 = vdwg.mxu0
  %v1928 = vmul.f32 %v1776, %v1776
  %v1929 = vsub.f32 1.0, %v1928
  %v1930 = vmul.f32 %v1929, 0.1
  %v1931 = vmul.f32 %v1930, %v1925
  %v1932 = vsub.f32 %v1775, %v1931
  %1933 = vst.msk [vmem:[#allocation2] sm:$0xff] %vm52, %v1932
  // Predicated region
  $region34: #{tpu_custom_call.1} parent=0 // pred_check
    _
  $region35: #{tpu_custom_call.1} parent=0 // pred_check_branch
    %1935 = sbr.rel (0) target = $region37
  $region36: #{tpu_custom_call.1} parent=0 // pred_region
    _
  $region37: #{tpu_custom_call.1} parent=0 // pred_fallthru
    _
  // Predicated region
  $region38: #{tpu_custom_call.1} parent=0 // pred_check
    _
  $region39: #{tpu_custom_call.1} parent=0 // pred_check_branch
    %1937 = sbr.rel (0) target = $region41
  $region40: #{tpu_custom_call.1} parent=0 // pred_region
    _
  $region41: #{tpu_custom_call.1} parent=0 // pred_fallthru
    _

</llo_original>
